<compile_context>
chip_gen: v7x
topology: tpu7x:2x2x1
jax: 0.10.0
libtpu: 0.0.40
codegen_flags: <defaults>
</compile_context>

<pallas_src>
import jax
import jax.numpy as jnp
from jax.experimental import pallas as pl
from jax.experimental.pallas import tpu as pltpu


def _conloss_kernel(v1_ref, v2_ref, lab1_ref, lab2_ref, ret_ref, sims_ref):
    # v1_ref / v2_ref : (TB, D) tile of the two embedding views.
    # lab1_ref/lab2_ref: (1, TB) lane-dense int32 labels for this row tile.
    # ret_ref          : (1, 1) f32 in SMEM (module's scalar return value).
    # sims_ref         : (1, TB) lane-dense f32 masked per-row dot products.
    v1 = v1_ref[...].astype(jnp.float32)
    v2 = v2_ref[...].astype(jnp.float32)

    # Per-row dot product: VPU multiply + XLU lane reduce (HBM-bandwidth bound;
    # deliberately NOT routed through the MXU).
    dots = jnp.sum(v1 * v2, axis=-1, keepdims=True)        # (TB, 1)
    dots = dots.reshape(1, -1)                              # (1, TB) lane-dense

    eq = lab1_ref[...] == lab2_ref[...]                     # (1, TB) bool
    sims_ref[...] = jnp.where(eq, dots, jnp.zeros_like(dots))

    # Module's return value: output_view1[0][0]. Only the block that owns
    # row 0 may write it.
    @pl.when(pl.program_id(0) == 0)
    def _():
        ret_ref[0, 0] = v1[0, 0]

    # TODO(synk): the PyTorch module writes each matching-pair similarity
    # (plus mag/p1/p2 strings) to 'sample.txt' -- file I/O has no Pallas
    # equivalent; the masked similarities are returned as an extra output.


def _pick_row_tile(batch, max_rows):
    """Largest row tile <= max_rows that divides batch and keeps blocks legal."""
    if batch <= max_rows:
        return batch                       # single full block: always legal
    for tb in range(min(max_rows, batch), 127, -1):
        if batch % tb == 0 and tb % 128 == 0:
            return tb
    return batch                           # fallback: one full block


def conloss_forward(output_view1, output_view2, labels, labels2,
                    *, max_block_rows=256):
    """Returns (output_view1[0, 0], sims) with
    sims[i] = dot(v1[i], v2[i]) if labels[i] == labels2[i] else 0.0."""
    B, D = output_view1.shape
    TB = _pick_row_tile(B, max_block_rows)
    num_blocks = B // TB

    lab1 = labels.reshape(1, B).astype(jnp.int32)
    lab2 = labels2.reshape(1, B).astype(jnp.int32)

    # VMEM budget: 2 inputs x 2 pipeline buffers x (TB, D) tiles + small
    # lane-dense label/sims blocks. Cap under the smallest physical VMEM
    # (v7x: 64 MiB); raise above v5e's 16 MiB default scoped limit.
    itemsize = jnp.dtype(output_view1.dtype).itemsize
    vmem_need = 2 * 2 * TB * D * itemsize + 3 * 2 * 2 * TB * 4
    vmem_limit = int(min(max(2 * vmem_need, 32 << 20), 64 << 20))

    ret, sims = pl.pallas_call(
        _conloss_kernel,
        out_shape=(
            jax.ShapeDtypeStruct((1, 1), jnp.float32),   # output_view1[0][0]
            jax.ShapeDtypeStruct((1, B), jnp.float32),   # masked per-row sims
        ),
        grid=(num_blocks,),
        in_specs=[
            pl.BlockSpec((TB, D), lambda i: (i, 0)),
            pl.BlockSpec((TB, D), lambda i: (i, 0)),
            pl.BlockSpec((1, TB), lambda i: (0, i)),
            pl.BlockSpec((1, TB), lambda i: (0, i)),
        ],
        out_specs=(
            pl.BlockSpec(memory_space=pltpu.MemorySpace.SMEM),
            pl.BlockSpec((1, TB), lambda i: (0, i)),
        ),
        compiler_params=pltpu.CompilerParams(
            dimension_semantics=("parallel",),
            vmem_limit_bytes=vmem_limit,
        ),
    )(output_view1, output_view2, lab1, lab2)

    ret_scalar = ret[0, 0].astype(output_view1.dtype)
    return ret_scalar, sims.reshape(B)


if __name__ == "__main__":
    key = jax.random.PRNGKey(0)
    k1, k2, k3, k4 = jax.random.split(key, 4)

    # Small but multi-block: B=256 rows of D=128 features, row tile = 128.
    B, D = 256, 128
    output_view1 = jax.random.normal(k1, (B, D), dtype=jnp.float32)
    output_view2 = jax.random.normal(k2, (B, D), dtype=jnp.float32)
    labels = jax.random.randint(k3, (B,), 0, 3, dtype=jnp.int32)
    labels2 = jax.random.randint(k4, (B,), 0, 3, dtype=jnp.int32)

    ret, sims = conloss_forward(output_view1, output_view2, labels, labels2,
                                max_block_rows=128)
    jax.block_until_ready((ret, sims))

    # Reference check in plain JAX.
    ref_ret = output_view1[0, 0]
    ref_dots = jnp.sum(output_view1 * output_view2, axis=-1)
    ref_sims = jnp.where(labels == labels2, ref_dots, 0.0)

    assert jnp.allclose(ret, ref_ret, atol=1e-6), (ret, ref_ret)
    assert jnp.allclose(sims, ref_sims, atol=1e-4, rtol=1e-5), "sims mismatch"

    print("KERNEL_OK")
</pallas_src>

<mosaic_0001>
module attributes {stable_mosaic.version = 11 : i64} {
  func.func @_conloss_kernel(%arg0: i32, %arg1: memref<128x128xf32, #tpu.memory_space<vmem>>, %arg2: memref<128x128xf32, #tpu.memory_space<vmem>>, %arg3: memref<1x128xi32, #tpu.memory_space<vmem>>, %arg4: memref<1x128xi32, #tpu.memory_space<vmem>>, %arg5: memref<1x1xf32, #tpu.memory_space<smem>>, %arg6: memref<1x128xf32, #tpu.memory_space<vmem>>) attributes {dimension_semantics = [#tpu.dimension_semantics<parallel>], iteration_bounds = array<i64: 2>, scalar_prefetch = 0 : i64, scratch_operands = 0 : i64, tpu.core_type = #tpu.core_type<tc>, window_params = [{transform_indices = @transform_0, window_bounds = array<i64: 128, 128>}, {transform_indices = @transform_1, window_bounds = array<i64: 128, 128>}, {transform_indices = @transform_2, window_bounds = array<i64: 1, 128>}, {transform_indices = @transform_3, window_bounds = array<i64: 1, 128>}, {transform_indices = @transform_4, window_bounds = array<i64: 1, 1>}, {transform_indices = @transform_5, window_bounds = array<i64: 1, 128>}]} {
    %c0 = arith.constant 0 : index
    %c0_0 = arith.constant 0 : index
    %0 = vector.load %arg1[%c0, %c0_0] : memref<128x128xf32, #tpu.memory_space<vmem>>, vector<128x128xf32>
    %c0_1 = arith.constant 0 : index
    %c0_2 = arith.constant 0 : index
    %1 = vector.load %arg2[%c0_1, %c0_2] : memref<128x128xf32, #tpu.memory_space<vmem>>, vector<128x128xf32>
    %2 = arith.mulf %0, %1 : vector<128x128xf32>
    %cst = arith.constant dense<0.000000e+00> : vector<128xf32>
    %3 = vector.multi_reduction <add>, %2, %cst [1] : vector<128x128xf32> to vector<128xf32>
    %4 = vector.shape_cast %3 : vector<128xf32> to vector<128x1xf32>
    %5 = vector.shape_cast %4 : vector<128x1xf32> to vector<1x128xf32>
    %c0_3 = arith.constant 0 : index
    %c0_4 = arith.constant 0 : index
    %6 = vector.load %arg3[%c0_3, %c0_4] : memref<1x128xi32, #tpu.memory_space<vmem>>, vector<1x128xi32>
    %c0_5 = arith.constant 0 : index
    %c0_6 = arith.constant 0 : index
    %7 = vector.load %arg4[%c0_5, %c0_6] : memref<1x128xi32, #tpu.memory_space<vmem>>, vector<1x128xi32>
    %8 = arith.cmpi eq, %6, %7 : vector<1x128xi32>
    %cst_7 = arith.constant 0.000000e+00 : f32
    %9 = vector.broadcast %cst_7 : f32 to vector<1x128xf32>
    %10 = arith.select %8, %5, %9 : vector<1x128xi1>, vector<1x128xf32>
    %c0_8 = arith.constant 0 : index
    %c0_9 = arith.constant 0 : index
    %11 = vector.load %arg6[%c0_8, %c0_9] : memref<1x128xf32, #tpu.memory_space<vmem>>, vector<1x128xf32>
    tpu.vector_store %arg6[%c0_8, %c0_9], %10 {strides = array<i32>} : memref<1x128xf32, #tpu.memory_space<vmem>>, vector<1x128xf32>,
    %c0_i32 = arith.constant 0 : i32
    %12 = arith.cmpi eq, %arg0, %c0_i32 : i32
    %13 = arith.extui %12 : i1 to i32
    %c0_i32_10 = arith.constant 0 : i32
    %14 = arith.cmpi ne, %13, %c0_i32_10 : i32
    scf.if %14 {
      %15 = vector.extract_strided_slice %0 {offsets = [0, 0], sizes = [1, 1], strides = [1, 1]} : vector<128x128xf32> to vector<1x1xf32>
      %16 = vector.extract %15[0, 0] : f32 from vector<1x1xf32>
      %c0_11 = arith.constant 0 : index
      %c0_12 = arith.constant 0 : index
      %17 = memref.load %arg5[%c0_11, %c0_12] : memref<1x1xf32, #tpu.memory_space<smem>>
      memref.store %16, %arg5[%c0_11, %c0_12] : memref<1x1xf32, #tpu.memory_space<smem>>
    } else {
    }
    return
  }
  func.func @transform_0(%arg0: i32) -> (i32, i32) {
    %c0_i32 = arith.constant 0 : i32
    %c0_i32_0 = arith.constant 0 : i32
    return %arg0, %c0_i32 : i32, i32
  }
  func.func @transform_1(%arg0: i32) -> (i32, i32) {
    %c0_i32 = arith.constant 0 : i32
    %c0_i32_0 = arith.constant 0 : i32
    return %arg0, %c0_i32 : i32, i32
  }
  func.func @transform_2(%arg0: i32) -> (i32, i32) {
    %c0_i32 = arith.constant 0 : i32
    %c0_i32_0 = arith.constant 0 : i32
    return %c0_i32, %arg0 : i32, i32
  }
  func.func @transform_3(%arg0: i32) -> (i32, i32) {
    %c0_i32 = arith.constant 0 : i32
    %c0_i32_0 = arith.constant 0 : i32
    return %c0_i32, %arg0 : i32, i32
  }
  func.func @transform_4(%arg0: i32) -> (i32, i32) {
    %c0_i32 = arith.constant 0 : i32
    %c0_i32_0 = arith.constant 0 : i32
    %c0_i32_1 = arith.constant 0 : i32
    return %c0_i32, %c0_i32_0 : i32, i32
  }
  func.func @transform_5(%arg0: i32) -> (i32, i32) {
    %c0_i32 = arith.constant 0 : i32
    %c0_i32_0 = arith.constant 0 : i32
    return %c0_i32, %arg0 : i32, i32
  }
}

</mosaic_0001>

<llo_original>
// kernel: tpu_custom_call.1
$region0: #{tpu_custom_call.1}
  #allocation0 [shape = 'u32[]', space=smem, size = 0x4, offset = 0x4, fixed_abs, tag = 'smem constant byte address 0x4 - core index']
  #allocation1 [shape = 'u32[144,128]{1,0:T(1,128)}', space=vmem, size = 0x12000, scoped, tag = 'internal scratch']
  %s0 = inlined_call_operand.hbm [shape: f32[256,128], index: 0, kind: input, shape index: {}]
  %s1 = inlined_call_operand.hbm [shape: f32[256,128], index: 1, kind: input, shape index: {}]
  %s2 = inlined_call_operand.vmem [shape: s32[1,256], index: 2, kind: input, shape index: {}]
  %s3 = inlined_call_operand.vmem [shape: s32[1,256], index: 3, kind: input, shape index: {}]
  %s4 = inlined_call_operand.hbm [shape: f32[1,1], index: 4, kind: output, shape index: {0}]
  %s5 = inlined_call_operand.hbm [shape: f32[1,256], index: 5, kind: output, shape index: {1}]
  %6 = xla_tuple %s4, %s5
  %s7 = sld [smem:[#allocation0]]
  $region69: #{tpu_custom_call.1} parent=0
    _
  %s9 = ssub.s32 1, %s7
  %s10 = scalar_select 0, %s9, %s7
  $region1: #{tpu_custom_call.1} parent=0
    #allocation2 [shape = 'u8[131072]{0}', space=vmem, size = 0x20000, scoped, tag = 'input window, operand 0']
    #allocation3 [shape = 's32[2]{0}', space=sflag, size = 0x8, scoped, tag = 'scoped memory for tpu_custom_call.1']
    #allocation4 [shape = 's32[2]{0}', space=sflag, size = 0x8, scoped, tag = 'scoped memory for tpu_custom_call.1']
    #allocation5 [shape = 's32[2]{0}', space=sflag, size = 0x8, scoped, tag = 'scoped memory for tpu_custom_call.1']
    #allocation6 [shape = 'u8[131072]{0}', space=vmem, size = 0x20000, scoped, tag = 'input window, operand 1']
    #allocation7 [shape = 's32[2]{0}', space=sflag, size = 0x8, scoped, tag = 'scoped memory for tpu_custom_call.1']
    #allocation8 [shape = 'u8[512]{0}', space=smem, size = 0x200, scoped, tag = 'output window, operand 0, single buffered']
    #allocation9 [shape = 'u8[1024]{0}', space=vmem, size = 0x400, scoped, tag = 'output window, operand 1']
    %11 = vsyncpa [#allocation3], 0
    %s12 = scalar_lea.sflag [#allocation3], 1
    %13 = vsyncpa %s12, 0
    %14 = vsyncpa [#allocation7], 0
    %s15 = scalar_lea.sflag [#allocation7], 1
    %16 = vsyncpa %s15, 0
    %17 = vsyncpa [#allocation5], 0
    %18 = vsyncpa [#allocation4], 0
    %s19 = scalar_lea.sflag [#allocation4], 1
    %20 = vsyncpa %s19, 0
    loop: start=0, step=1, limit=4
    $region2: #{tpu_custom_call.1} parent=1 // loop_pre_header
      _
    $region3: #{tpu_custom_call.1} parent=1 // loop_header
      %s22 = sphi 0, %s26
      %p23 = scmp.ge.s32.totalorder %s22, 4
      %s32 = sphi 0, %s34
      %s35 = sphi 0, %s32
      %s36 = sphi 0, %s35
      %s52 = sphi 0, %s36
      %s58 = sphi 0, %s60
      %s61 = sphi 0, %s58
      %s62 = sphi 0, %s61
      %s78 = sphi 0, %s62
      %s84 = sphi 0, %s86
      %s87 = sphi 0, %s84
      %s88 = sphi 0, %s87
      %s104 = sphi 0, %s88
      %s110 = sphi 0, %s112
      %s113 = sphi 0, %s110
      %s114 = sphi 0, %s113
      %s130 = sphi 0, %s114
      %s134 = sphi 0, %s134
      %s136 = sphi 0, %s134
      %s137 = sphi 0, %s136
      %s151 = sphi 0, %s137
      %s157 = sphi 0, %s159
      %s160 = sphi 0, %s157
      %s161 = sphi 0, %s160
      %s177 = sphi 0, %s161
    $region4: #{tpu_custom_call.1} parent=1 // loop_header_branch
      %25 = sbr.rel (%p23) target = $region8
    $region5: #{tpu_custom_call.1} parent=1 // loop_body
      %s27 = ssub.s32 %s22, 1
      %s28 = ssub.s32 %s22, 2
      %s29 = sadd.s32 %s22, 1
      %s30 = ssub.s32 %s22, %s29
      %p31 = scmp.eq.s32.totalorder %s30, 0
      %s33 = sadd.s32 %s32, 1
      %s34 = scalar_select %p31, %s32, %s33
      %p37 = pneg %p31
      %p38 = scmp.eq.s32.totalorder %s22, 1
      %p39 = por %p37, %p38
      %p40 = scmp.ne.s32.totalorder %s32, %s35
      %p41 = scmp.eq.s32.totalorder %s22, 0
      %p42 = por %p40, %p41
      %p43 = scmp.ne.s32.totalorder %s32, %s35
      %p44 = scmp.eq.s32.totalorder %s27, 1
      %p45 = por %p43, %p44
      %p46 = scmp.ne.s32.totalorder %s35, %s36
      %p47 = scmp.eq.s32.totalorder %s27, 0
      %p48 = por %p46, %p47
      %p49 = scmp.ne.s32.totalorder %s35, %s36
      %p50 = scmp.eq.s32.totalorder %s28, 1
      %p51 = por %p49, %p50
      %p53 = scmp.ne.s32.totalorder %s36, %s52
      %p54 = scmp.eq.s32.totalorder %s28, 0
      %p55 = por %p53, %p54
      %s56 = ssub.s32 %s22, %s29
      %p57 = scmp.eq.s32.totalorder %s56, 0
      %s59 = sadd.s32 %s58, 1
      %s60 = scalar_select %p57, %s58, %s59
      %p63 = pneg %p57
      %p64 = scmp.eq.s32.totalorder %s22, 1
      %p65 = por %p63, %p64
      %p66 = scmp.ne.s32.totalorder %s58, %s61
      %p67 = scmp.eq.s32.totalorder %s22, 0
      %p68 = por %p66, %p67
      %p69 = scmp.ne.s32.totalorder %s58, %s61
      %p70 = scmp.eq.s32.totalorder %s27, 1
      %p71 = por %p69, %p70
      %p72 = scmp.ne.s32.totalorder %s61, %s62
      %p73 = scmp.eq.s32.totalorder %s27, 0
      %p74 = por %p72, %p73
      %p75 = scmp.ne.s32.totalorder %s61, %s62
      %p76 = scmp.eq.s32.totalorder %s28, 1
      %p77 = por %p75, %p76
      %p79 = scmp.ne.s32.totalorder %s62, %s78
      %p80 = scmp.eq.s32.totalorder %s28, 0
      %p81 = por %p79, %p80
      %s82 = ssub.s32 %s22, %s29
      %p83 = scmp.eq.s32.totalorder %s82, 0
      %s85 = sadd.s32 %s84, 1
      %s86 = scalar_select %p83, %s84, %s85
      %p89 = pneg %p83
      %p90 = scmp.eq.s32.totalorder %s22, 1
      %p91 = por %p89, %p90
      %p92 = scmp.ne.s32.totalorder %s84, %s87
      %p93 = scmp.eq.s32.totalorder %s22, 0
      %p94 = por %p92, %p93
      %p95 = scmp.ne.s32.totalorder %s84, %s87
      %p96 = scmp.eq.s32.totalorder %s27, 1
      %p97 = por %p95, %p96
      %p98 = scmp.ne.s32.totalorder %s87, %s88
      %p99 = scmp.eq.s32.totalorder %s27, 0
      %p100 = por %p98, %p99
      %p101 = scmp.ne.s32.totalorder %s87, %s88
      %p102 = scmp.eq.s32.totalorder %s28, 1
      %p103 = por %p101, %p102
      %p105 = scmp.ne.s32.totalorder %s88, %s104
      %p106 = scmp.eq.s32.totalorder %s28, 0
      %p107 = por %p105, %p106
      %s108 = ssub.s32 %s22, %s29
      %p109 = scmp.eq.s32.totalorder %s108, 0
      %s111 = sadd.s32 %s110, 1
      %s112 = scalar_select %p109, %s110, %s111
      %p115 = pneg %p109
      %p116 = scmp.eq.s32.totalorder %s22, 1
      %p117 = por %p115, %p116
      %p118 = scmp.ne.s32.totalorder %s110, %s113
      %p119 = scmp.eq.s32.totalorder %s22, 0
      %p120 = por %p118, %p119
      %p121 = scmp.ne.s32.totalorder %s110, %s113
      %p122 = scmp.eq.s32.totalorder %s27, 1
      %p123 = por %p121, %p122
      %p124 = scmp.ne.s32.totalorder %s113, %s114
      %p125 = scmp.eq.s32.totalorder %s27, 0
      %p126 = por %p124, %p125
      %p127 = scmp.ne.s32.totalorder %s113, %s114
      %p128 = scmp.eq.s32.totalorder %s28, 1
      %p129 = por %p127, %p128
      %p131 = scmp.ne.s32.totalorder %s114, %s130
      %p132 = scmp.eq.s32.totalorder %s28, 0
      %p133 = por %p131, %p132
      %s135 = sadd.s32 %s134, 1
      %p138 = scmp.eq.s32.totalorder %s22, 1
      %p139 = scmp.ne.s32.totalorder %s134, %s136
      %p140 = scmp.eq.s32.totalorder %s22, 0
      %p141 = por %p139, %p140
      %p142 = scmp.ne.s32.totalorder %s134, %s136
      %p143 = scmp.eq.s32.totalorder %s27, 1
      %p144 = por %p142, %p143
      %p145 = scmp.ne.s32.totalorder %s136, %s137
      %p146 = scmp.eq.s32.totalorder %s27, 0
      %p147 = por %p145, %p146
      %p148 = scmp.ne.s32.totalorder %s136, %s137
      %p149 = scmp.eq.s32.totalorder %s28, 1
      %p150 = por %p148, %p149
      %p152 = scmp.ne.s32.totalorder %s137, %s151
      %p153 = scmp.eq.s32.totalorder %s28, 0
      %p154 = por %p152, %p153
      %s155 = ssub.s32 %s22, %s29
      %p156 = scmp.eq.s32.totalorder %s155, 0
      %s158 = sadd.s32 %s157, 1
      %s159 = scalar_select %p156, %s157, %s158
      %p162 = pneg %p156
      %p163 = scmp.eq.s32.totalorder %s22, 1
      %p164 = por %p162, %p163
      %p165 = scmp.ne.s32.totalorder %s157, %s160
      %p166 = scmp.eq.s32.totalorder %s22, 0
      %p167 = por %p165, %p166
      %p168 = scmp.ne.s32.totalorder %s157, %s160
      %p169 = scmp.eq.s32.totalorder %s27, 1
      %p170 = por %p168, %p169
      %p171 = scmp.ne.s32.totalorder %s160, %s161
      %p172 = scmp.eq.s32.totalorder %s27, 0
      %p173 = por %p171, %p172
      %p174 = scmp.ne.s32.totalorder %s160, %s161
      %p175 = scmp.eq.s32.totalorder %s28, 1
      %p176 = por %p174, %p175
      %p178 = scmp.ne.s32.totalorder %s161, %s177
      %p179 = scmp.eq.s32.totalorder %s28, 0
      %p180 = por %p178, %p179
      %p181 = scmp.le.s32.totalorder 1, %s22
      %p182 = scmp.lt.s32.totalorder %s22, 3
      %p183 = pnand %p181, %p182
      %p184 = pneg %p183
      // Predicated region
      $region9: #{tpu_custom_call.1} parent=5 // pred_check
        _
      $region10: #{tpu_custom_call.1} parent=5 // pred_check_branch
        %186 = sbr.rel (%p183) target = $region12
      $region11: #{tpu_custom_call.1} parent=5 // pred_region
        %s187 = ssub.s32 %s22, 1
      $region12: #{tpu_custom_call.1} parent=5 // pred_fallthru
        _
      %p188 = scmp.lt.s32.totalorder %s22, 2
      // Predicated region
      $region13: #{tpu_custom_call.1} parent=5 // pred_check
        %p189 = pneg %p188
      $region14: #{tpu_custom_call.1} parent=5 // pred_check_branch
        %191 = sbr.rel (%p189) target = $region16
      $region15: #{tpu_custom_call.1} parent=5 // pred_region
        // Predicated region
        $region17: #{tpu_custom_call.1} parent=15 // pred_check
          %p192 = pneg %p42
        $region18: #{tpu_custom_call.1} parent=15 // pred_check_branch
          %194 = sbr.rel (%p192) target = $region20
        $region19: #{tpu_custom_call.1} parent=15 // pred_region
          %s195 = sand.u32 %s32, 1
          %s196 = scalar_lea.sflag [#allocation3], %s195
          %s197 = sand.u32 %s32, 1
          %s198 = smul.addr %s197, 128
          %s199 = scalar_lea.vmem [#allocation2], %s198
          %s200 = smul.u32 16, %s22
          %s202 = ssub.s32 2048, 2048
          %203 = vsyncadd %s196, %s202
          %s204 = smul.addr %s200, 128
          %s205 = scalar_lea.hbm %s0, %s204
          %s206 = sshll.u32 %s199, 4
          %s207 = int_to_ptr.vmem [resolvable:$true] %s206
          %212 = dma.hbm_to_vmem [thread:$0]  %s205, 2048, %s207, %s196, 128, 128, 8
        $region20: #{tpu_custom_call.1} parent=15 // pred_fallthru
          _
        // Predicated region
        $region21: #{tpu_custom_call.1} parent=15 // pred_check
          %p213 = pneg %p68
        $region22: #{tpu_custom_call.1} parent=15 // pred_check_branch
          %215 = sbr.rel (%p213) target = $region24
        $region23: #{tpu_custom_call.1} parent=15 // pred_region
          %s216 = sand.u32 %s58, 1
          %s217 = scalar_lea.sflag [#allocation7], %s216
          %s218 = sand.u32 %s58, 1
          %s219 = smul.addr %s218, 128
          %s220 = scalar_lea.vmem [#allocation6], %s219
          %s221 = smul.u32 16, %s22
          %s223 = ssub.s32 2048, 2048
          %224 = vsyncadd %s217, %s223
          %s225 = smul.addr %s221, 128
          %s226 = scalar_lea.hbm %s1, %s225
          %s227 = sshll.u32 %s220, 4
          %s228 = int_to_ptr.vmem [resolvable:$true] %s227
          %233 = dma.hbm_to_vmem [thread:$0]  %s226, 2048, %s228, %s217, 128, 128, 8
        $region24: #{tpu_custom_call.1} parent=15 // pred_fallthru
          _
        // Predicated region
        $region25: #{tpu_custom_call.1} parent=15 // pred_check
          %p234 = pneg %p94
        $region26: #{tpu_custom_call.1} parent=15 // pred_check_branch
          %236 = sbr.rel (%p234) target = $region28
        $region27: #{tpu_custom_call.1} parent=15 // pred_region
          %p237 = scmp.lt.s32.totalorder %s22, 1
          %s238 = scalar_select %p237, %s22, 1
          %s239 = scalar_lea.vmem %s2, %s238
        $region28: #{tpu_custom_call.1} parent=15 // pred_fallthru
          _
        // Predicated region
        $region29: #{tpu_custom_call.1} parent=15 // pred_check
          %p240 = pneg %p120
        $region30: #{tpu_custom_call.1} parent=15 // pred_check_branch
          %242 = sbr.rel (%p240) target = $region32
        $region31: #{tpu_custom_call.1} parent=15 // pred_region
          %p243 = scmp.lt.s32.totalorder %s22, 1
          %s244 = scalar_select %p243, %s22, 1
          %s245 = scalar_lea.vmem %s3, %s244
        $region32: #{tpu_custom_call.1} parent=15 // pred_fallthru
          _
      $region16: #{tpu_custom_call.1} parent=5 // pred_fallthru
        _
      %p246 = scmp.le.s32.totalorder 1, %s22
      %p247 = scmp.lt.s32.totalorder %s22, 3
      %p248 = pnand %p246, %p247
      %p249 = pneg %p248
      // Predicated region
      $region33: #{tpu_custom_call.1} parent=5 // pred_check
        _
      $region34: #{tpu_custom_call.1} parent=5 // pred_check_branch
        %251 = sbr.rel (%p248) target = $region36
      $region35: #{tpu_custom_call.1} parent=5 // pred_region
        %s252 = ssub.s32 %s22, 1
        %s253 = sand.u32 %s35, 1
        %s254 = scalar_lea.sflag [#allocation3], %s253
        %s255 = sand.u32 %s35, 1
        %s256 = smul.addr %s255, 128
        %s257 = scalar_lea.vmem [#allocation2], %s256
        // Predicated region
        $region37: #{tpu_custom_call.1} parent=35 // pred_check
          %p258 = pneg %p48
        $region38: #{tpu_custom_call.1} parent=35 // pred_check_branch
          %260 = sbr.rel (%p258) target = $region40
        $region39: #{tpu_custom_call.1} parent=35 // pred_region
          %261 = dma.done %s254, 2048
        $region40: #{tpu_custom_call.1} parent=35 // pred_fallthru
          _
        %s262 = sand.u32 %s61, 1
        %s263 = scalar_lea.sflag [#allocation7], %s262
        %s264 = sand.u32 %s61, 1
        %s265 = smul.addr %s264, 128
        %s266 = scalar_lea.vmem [#allocation6], %s265
        // Predicated region
        $region41: #{tpu_custom_call.1} parent=35 // pred_check
          %p267 = pneg %p74
        $region42: #{tpu_custom_call.1} parent=35 // pred_check_branch
          %269 = sbr.rel (%p267) target = $region44
        $region43: #{tpu_custom_call.1} parent=35 // pred_region
          %270 = dma.done %s263, 2048
        $region44: #{tpu_custom_call.1} parent=35 // pred_fallthru
          _
        %s271 = sand.u32 %s35, 1
        %s272 = scalar_lea.sflag [#allocation3], %s271
        %s273 = sand.u32 %s35, 1
        %s274 = smul.addr %s273, 128
        %s275 = scalar_lea.vmem [#allocation2], %s274
        %p276 = pneg %p48
        %p277 = pneg %p45
        %s278 = sand.u32 %s61, 1
        %s279 = scalar_lea.sflag [#allocation7], %s278
        %s280 = sand.u32 %s61, 1
        %s281 = smul.addr %s280, 128
        %s282 = scalar_lea.vmem [#allocation6], %s281
        %p283 = pneg %p74
        %p284 = pneg %p71
        %p285 = scmp.lt.s32.totalorder %s27, 1
        %s286 = scalar_select %p285, %s27, 1
        %s287 = scalar_lea.vmem %s2, %s286
        %p288 = pneg %p100
        %p289 = pneg %p97
        %p290 = scmp.lt.s32.totalorder %s27, 1
        %s291 = scalar_select %p290, %s27, 1
        %s292 = scalar_lea.vmem %s3, %s291
        %p293 = pneg %p126
        %p294 = pneg %p123
        %p295 = pneg %p147
        %p296 = pneg %p144
        %p297 = pneg %p173
        %p298 = pneg %p170
        %s299 = sand.u32 %s160, 1
        %s300 = scalar_lea.sflag [#allocation4], %s299
        %s301 = sand.u32 %s160, 1
        %s302 = scalar_lea.vmem [#allocation9], %s301
        %s303 = smul.u32 16, %s27
        %s304 = smul.u32 16, %s27
        %p305 = scmp.lt.s32.totalorder %s27, 1
        %s306 = scalar_select %p305, %s27, 1
        %s307 = scalar_lea.vmem %s2, %s306
        %p308 = scmp.lt.s32.totalorder %s27, 1
        %s309 = scalar_select %p308, %s27, 1
        %s310 = scalar_lea.vmem %s3, %s309
        %v311 = vld [vmem:[%s257] sm:$0xff]
        %v312 = vld [vmem:[%s257 + $0x8] sm:$0xff]
        %v313 = vld [vmem:[%s257 + $0x10] sm:$0xff]
        %v314 = vld [vmem:[%s257 + $0x18] sm:$0xff]
        %v315 = vld [vmem:[%s257 + $0x20] sm:$0xff]
        %v316 = vld [vmem:[%s257 + $0x28] sm:$0xff]
        %v317 = vld [vmem:[%s257 + $0x30] sm:$0xff]
        %v318 = vld [vmem:[%s257 + $0x38] sm:$0xff]
        %v319 = vld [vmem:[%s257 + $0x40] sm:$0xff]
        %v320 = vld [vmem:[%s257 + $0x48] sm:$0xff]
        %v321 = vld [vmem:[%s257 + $0x50] sm:$0xff]
        %v322 = vld [vmem:[%s257 + $0x58] sm:$0xff]
        %v323 = vld [vmem:[%s257 + $0x60] sm:$0xff]
        %v324 = vld [vmem:[%s257 + $0x68] sm:$0xff]
        %v325 = vld [vmem:[%s257 + $0x70] sm:$0xff]
        %v326 = vld [vmem:[%s257 + $0x78] sm:$0xff]
        %v327 = vld [vmem:[%s266] sm:$0xff]
        %v328 = vld [vmem:[%s266 + $0x8] sm:$0xff]
        %v329 = vld [vmem:[%s266 + $0x10] sm:$0xff]
        %v330 = vld [vmem:[%s266 + $0x18] sm:$0xff]
        %v331 = vld [vmem:[%s266 + $0x20] sm:$0xff]
        %v332 = vld [vmem:[%s266 + $0x28] sm:$0xff]
        %v333 = vld [vmem:[%s266 + $0x30] sm:$0xff]
        %v334 = vld [vmem:[%s266 + $0x38] sm:$0xff]
        %v335 = vld [vmem:[%s266 + $0x40] sm:$0xff]
        %v336 = vld [vmem:[%s266 + $0x48] sm:$0xff]
        %v337 = vld [vmem:[%s266 + $0x50] sm:$0xff]
        %v338 = vld [vmem:[%s266 + $0x58] sm:$0xff]
        %v339 = vld [vmem:[%s266 + $0x60] sm:$0xff]
        %v340 = vld [vmem:[%s266 + $0x68] sm:$0xff]
        %v341 = vld [vmem:[%s266 + $0x70] sm:$0xff]
        %v342 = vld [vmem:[%s266 + $0x78] sm:$0xff]
        %v343 = vmul.f32 %v311, %v327
        %v344 = vmul.f32 %v312, %v328
        %v345 = vmul.f32 %v313, %v329
        %v346 = vmul.f32 %v314, %v330
        %v347 = vmul.f32 %v315, %v331
        %v348 = vmul.f32 %v316, %v332
        %v349 = vmul.f32 %v317, %v333
        %v350 = vmul.f32 %v318, %v334
        %v351 = vmul.f32 %v319, %v335
        %v352 = vmul.f32 %v320, %v336
        %v353 = vmul.f32 %v321, %v337
        %v354 = vmul.f32 %v322, %v338
        %v355 = vmul.f32 %v323, %v339
        %v356 = vmul.f32 %v324, %v340
        %v357 = vmul.f32 %v325, %v341
        %v358 = vmul.f32 %v326, %v342
        %359 = vadd.xlane.f32.xlu0 %v343
        %v360 = vpop.xlane.xlu0 %359
        %361 = vadd.xlane.f32.xlu0 %v344
        %v362 = vpop.xlane.xlu0 %361
        %363 = vadd.xlane.f32.xlu0 %v345
        %v364 = vpop.xlane.xlu0 %363
        %365 = vadd.xlane.f32.xlu0 %v346
        %v366 = vpop.xlane.xlu0 %365
        %367 = vadd.xlane.f32.xlu0 %v347
        %v368 = vpop.xlane.xlu0 %367
        %369 = vadd.xlane.f32.xlu0 %v348
        %v370 = vpop.xlane.xlu0 %369
        %371 = vadd.xlane.f32.xlu0 %v349
        %v372 = vpop.xlane.xlu0 %371
        %373 = vadd.xlane.f32.xlu0 %v350
        %v374 = vpop.xlane.xlu0 %373
        %375 = vadd.xlane.f32.xlu0 %v351
        %v376 = vpop.xlane.xlu0 %375
        %377 = vadd.xlane.f32.xlu0 %v352
        %v378 = vpop.xlane.xlu0 %377
        %379 = vadd.xlane.f32.xlu0 %v353
        %v380 = vpop.xlane.xlu0 %379
        %381 = vadd.xlane.f32.xlu0 %v354
        %v382 = vpop.xlane.xlu0 %381
        %383 = vadd.xlane.f32.xlu0 %v355
        %v384 = vpop.xlane.xlu0 %383
        %385 = vadd.xlane.f32.xlu0 %v356
        %v386 = vpop.xlane.xlu0 %385
        %387 = vadd.xlane.f32.xlu0 %v357
        %v388 = vpop.xlane.xlu0 %387
        %389 = vadd.xlane.f32.xlu0 %v358
        %v390 = vpop.xlane.xlu0 %389
        %v391 = vld [vmem:[%s307] sm:$0x1]
        %v392 = vld [vmem:[%s310] sm:$0x1]
        %vm393 = vcmp.eq.s32.totalorder %v391, %v392
        %v410 = vlaneseq
        %v411 = vshrl.u32 %v410, 7
        %v412 = vsub.s32 0, %v411
        %v413 = vrot.slane %v360, %v412
        %v414 = vlaneseq
        %v415 = vshrl.u32 %v414, 7
        %v416 = vsub.s32 1, %v415
        %v417 = vrot.slane %v360, %v416
        %v418 = vlaneseq
        %v419 = vshrl.u32 %v418, 7
        %v420 = vsub.s32 2, %v419
        %v421 = vrot.slane %v360, %v420
        %v422 = vlaneseq
        %v423 = vshrl.u32 %v422, 7
        %v424 = vsub.s32 3, %v423
        %v425 = vrot.slane %v360, %v424
        %v426 = vlaneseq
        %v427 = vshrl.u32 %v426, 7
        %v428 = vsub.s32 4, %v427
        %v429 = vrot.slane %v360, %v428
        %v430 = vlaneseq
        %v431 = vshrl.u32 %v430, 7
        %v432 = vsub.s32 5, %v431
        %v433 = vrot.slane %v360, %v432
        %v434 = vlaneseq
        %v435 = vshrl.u32 %v434, 7
        %v436 = vsub.s32 6, %v435
        %v437 = vrot.slane %v360, %v436
        %v438 = vlaneseq
        %v439 = vshrl.u32 %v438, 7
        %v440 = vsub.s32 7, %v439
        %v441 = vrot.slane %v360, %v440
        %v442 = vlaneseq
        %v443 = vshrl.u32 %v442, 7
        %v444 = vsub.s32 0, %v443
        %v445 = vrot.slane %v362, %v444
        %v446 = vlaneseq
        %v447 = vshrl.u32 %v446, 7
        %v448 = vsub.s32 1, %v447
        %v449 = vrot.slane %v362, %v448
        %v450 = vlaneseq
        %v451 = vshrl.u32 %v450, 7
        %v452 = vsub.s32 2, %v451
        %v453 = vrot.slane %v362, %v452
        %v454 = vlaneseq
        %v455 = vshrl.u32 %v454, 7
        %v456 = vsub.s32 3, %v455
        %v457 = vrot.slane %v362, %v456
        %v458 = vlaneseq
        %v459 = vshrl.u32 %v458, 7
        %v460 = vsub.s32 4, %v459
        %v461 = vrot.slane %v362, %v460
        %v462 = vlaneseq
        %v463 = vshrl.u32 %v462, 7
        %v464 = vsub.s32 5, %v463
        %v465 = vrot.slane %v362, %v464
        %v466 = vlaneseq
        %v467 = vshrl.u32 %v466, 7
        %v468 = vsub.s32 6, %v467
        %v469 = vrot.slane %v362, %v468
        %v470 = vlaneseq
        %v471 = vshrl.u32 %v470, 7
        %v472 = vsub.s32 7, %v471
        %v473 = vrot.slane %v362, %v472
        %v474 = vlaneseq
        %v475 = vshrl.u32 %v474, 7
        %v476 = vsub.s32 0, %v475
        %v477 = vrot.slane %v364, %v476
        %v478 = vlaneseq
        %v479 = vshrl.u32 %v478, 7
        %v480 = vsub.s32 1, %v479
        %v481 = vrot.slane %v364, %v480
        %v482 = vlaneseq
        %v483 = vshrl.u32 %v482, 7
        %v484 = vsub.s32 2, %v483
        %v485 = vrot.slane %v364, %v484
        %v486 = vlaneseq
        %v487 = vshrl.u32 %v486, 7
        %v488 = vsub.s32 3, %v487
        %v489 = vrot.slane %v364, %v488
        %v490 = vlaneseq
        %v491 = vshrl.u32 %v490, 7
        %v492 = vsub.s32 4, %v491
        %v493 = vrot.slane %v364, %v492
        %v494 = vlaneseq
        %v495 = vshrl.u32 %v494, 7
        %v496 = vsub.s32 5, %v495
        %v497 = vrot.slane %v364, %v496
        %v498 = vlaneseq
        %v499 = vshrl.u32 %v498, 7
        %v500 = vsub.s32 6, %v499
        %v501 = vrot.slane %v364, %v500
        %v502 = vlaneseq
        %v503 = vshrl.u32 %v502, 7
        %v504 = vsub.s32 7, %v503
        %v505 = vrot.slane %v364, %v504
        %v506 = vlaneseq
        %v507 = vshrl.u32 %v506, 7
        %v508 = vsub.s32 0, %v507
        %v509 = vrot.slane %v366, %v508
        %v510 = vlaneseq
        %v511 = vshrl.u32 %v510, 7
        %v512 = vsub.s32 1, %v511
        %v513 = vrot.slane %v366, %v512
        %v514 = vlaneseq
        %v515 = vshrl.u32 %v514, 7
        %v516 = vsub.s32 2, %v515
        %v517 = vrot.slane %v366, %v516
        %v518 = vlaneseq
        %v519 = vshrl.u32 %v518, 7
        %v520 = vsub.s32 3, %v519
        %v521 = vrot.slane %v366, %v520
        %v522 = vlaneseq
        %v523 = vshrl.u32 %v522, 7
        %v524 = vsub.s32 4, %v523
        %v525 = vrot.slane %v366, %v524
        %v526 = vlaneseq
        %v527 = vshrl.u32 %v526, 7
        %v528 = vsub.s32 5, %v527
        %v529 = vrot.slane %v366, %v528
        %v530 = vlaneseq
        %v531 = vshrl.u32 %v530, 7
        %v532 = vsub.s32 6, %v531
        %v533 = vrot.slane %v366, %v532
        %v534 = vlaneseq
        %v535 = vshrl.u32 %v534, 7
        %v536 = vsub.s32 7, %v535
        %v537 = vrot.slane %v366, %v536
        %v538 = vlaneseq
        %v539 = vshrl.u32 %v538, 7
        %v540 = vsub.s32 0, %v539
        %v541 = vrot.slane %v368, %v540
        %v542 = vlaneseq
        %v543 = vshrl.u32 %v542, 7
        %v544 = vsub.s32 1, %v543
        %v545 = vrot.slane %v368, %v544
        %v546 = vlaneseq
        %v547 = vshrl.u32 %v546, 7
        %v548 = vsub.s32 2, %v547
        %v549 = vrot.slane %v368, %v548
        %v550 = vlaneseq
        %v551 = vshrl.u32 %v550, 7
        %v552 = vsub.s32 3, %v551
        %v553 = vrot.slane %v368, %v552
        %v554 = vlaneseq
        %v555 = vshrl.u32 %v554, 7
        %v556 = vsub.s32 4, %v555
        %v557 = vrot.slane %v368, %v556
        %v558 = vlaneseq
        %v559 = vshrl.u32 %v558, 7
        %v560 = vsub.s32 5, %v559
        %v561 = vrot.slane %v368, %v560
        %v562 = vlaneseq
        %v563 = vshrl.u32 %v562, 7
        %v564 = vsub.s32 6, %v563
        %v565 = vrot.slane %v368, %v564
        %v566 = vlaneseq
        %v567 = vshrl.u32 %v566, 7
        %v568 = vsub.s32 7, %v567
        %v569 = vrot.slane %v368, %v568
        %v570 = vlaneseq
        %v571 = vshrl.u32 %v570, 7
        %v572 = vsub.s32 0, %v571
        %v573 = vrot.slane %v370, %v572
        %v574 = vlaneseq
        %v575 = vshrl.u32 %v574, 7
        %v576 = vsub.s32 1, %v575
        %v577 = vrot.slane %v370, %v576
        %v578 = vlaneseq
        %v579 = vshrl.u32 %v578, 7
        %v580 = vsub.s32 2, %v579
        %v581 = vrot.slane %v370, %v580
        %v582 = vlaneseq
        %v583 = vshrl.u32 %v582, 7
        %v584 = vsub.s32 3, %v583
        %v585 = vrot.slane %v370, %v584
        %v586 = vlaneseq
        %v587 = vshrl.u32 %v586, 7
        %v588 = vsub.s32 4, %v587
        %v589 = vrot.slane %v370, %v588
        %v590 = vlaneseq
        %v591 = vshrl.u32 %v590, 7
        %v592 = vsub.s32 5, %v591
        %v593 = vrot.slane %v370, %v592
        %v594 = vlaneseq
        %v595 = vshrl.u32 %v594, 7
        %v596 = vsub.s32 6, %v595
        %v597 = vrot.slane %v370, %v596
        %v598 = vlaneseq
        %v599 = vshrl.u32 %v598, 7
        %v600 = vsub.s32 7, %v599
        %v601 = vrot.slane %v370, %v600
        %v602 = vlaneseq
        %v603 = vshrl.u32 %v602, 7
        %v604 = vsub.s32 0, %v603
        %v605 = vrot.slane %v372, %v604
        %v606 = vlaneseq
        %v607 = vshrl.u32 %v606, 7
        %v608 = vsub.s32 1, %v607
        %v609 = vrot.slane %v372, %v608
        %v610 = vlaneseq
        %v611 = vshrl.u32 %v610, 7
        %v612 = vsub.s32 2, %v611
        %v613 = vrot.slane %v372, %v612
        %v614 = vlaneseq
        %v615 = vshrl.u32 %v614, 7
        %v616 = vsub.s32 3, %v615
        %v617 = vrot.slane %v372, %v616
        %v618 = vlaneseq
        %v619 = vshrl.u32 %v618, 7
        %v620 = vsub.s32 4, %v619
        %v621 = vrot.slane %v372, %v620
        %v622 = vlaneseq
        %v623 = vshrl.u32 %v622, 7
        %v624 = vsub.s32 5, %v623
        %v625 = vrot.slane %v372, %v624
        %v626 = vlaneseq
        %v627 = vshrl.u32 %v626, 7
        %v628 = vsub.s32 6, %v627
        %v629 = vrot.slane %v372, %v628
        %v630 = vlaneseq
        %v631 = vshrl.u32 %v630, 7
        %v632 = vsub.s32 7, %v631
        %v633 = vrot.slane %v372, %v632
        %v634 = vlaneseq
        %v635 = vshrl.u32 %v634, 7
        %v636 = vsub.s32 0, %v635
        %v637 = vrot.slane %v374, %v636
        %v638 = vlaneseq
        %v639 = vshrl.u32 %v638, 7
        %v640 = vsub.s32 1, %v639
        %v641 = vrot.slane %v374, %v640
        %v642 = vlaneseq
        %v643 = vshrl.u32 %v642, 7
        %v644 = vsub.s32 2, %v643
        %v645 = vrot.slane %v374, %v644
        %v646 = vlaneseq
        %v647 = vshrl.u32 %v646, 7
        %v648 = vsub.s32 3, %v647
        %v649 = vrot.slane %v374, %v648
        %v650 = vlaneseq
        %v651 = vshrl.u32 %v650, 7
        %v652 = vsub.s32 4, %v651
        %v653 = vrot.slane %v374, %v652
        %v654 = vlaneseq
        %v655 = vshrl.u32 %v654, 7
        %v656 = vsub.s32 5, %v655
        %v657 = vrot.slane %v374, %v656
        %v658 = vlaneseq
        %v659 = vshrl.u32 %v658, 7
        %v660 = vsub.s32 6, %v659
        %v661 = vrot.slane %v374, %v660
        %v662 = vlaneseq
        %v663 = vshrl.u32 %v662, 7
        %v664 = vsub.s32 7, %v663
        %v665 = vrot.slane %v374, %v664
        %v666 = vlaneseq
        %v667 = vshrl.u32 %v666, 7
        %v668 = vsub.s32 0, %v667
        %v669 = vrot.slane %v376, %v668
        %v670 = vlaneseq
        %v671 = vshrl.u32 %v670, 7
        %v672 = vsub.s32 1, %v671
        %v673 = vrot.slane %v376, %v672
        %v674 = vlaneseq
        %v675 = vshrl.u32 %v674, 7
        %v676 = vsub.s32 2, %v675
        %v677 = vrot.slane %v376, %v676
        %v678 = vlaneseq
        %v679 = vshrl.u32 %v678, 7
        %v680 = vsub.s32 3, %v679
        %v681 = vrot.slane %v376, %v680
        %v682 = vlaneseq
        %v683 = vshrl.u32 %v682, 7
        %v684 = vsub.s32 4, %v683
        %v685 = vrot.slane %v376, %v684
        %v686 = vlaneseq
        %v687 = vshrl.u32 %v686, 7
        %v688 = vsub.s32 5, %v687
        %v689 = vrot.slane %v376, %v688
        %v690 = vlaneseq
        %v691 = vshrl.u32 %v690, 7
        %v692 = vsub.s32 6, %v691
        %v693 = vrot.slane %v376, %v692
        %v694 = vlaneseq
        %v695 = vshrl.u32 %v694, 7
        %v696 = vsub.s32 7, %v695
        %v697 = vrot.slane %v376, %v696
        %v698 = vlaneseq
        %v699 = vshrl.u32 %v698, 7
        %v700 = vsub.s32 0, %v699
        %v701 = vrot.slane %v378, %v700
        %v702 = vlaneseq
        %v703 = vshrl.u32 %v702, 7
        %v704 = vsub.s32 1, %v703
        %v705 = vrot.slane %v378, %v704
        %v706 = vlaneseq
        %v707 = vshrl.u32 %v706, 7
        %v708 = vsub.s32 2, %v707
        %v709 = vrot.slane %v378, %v708
        %v710 = vlaneseq
        %v711 = vshrl.u32 %v710, 7
        %v712 = vsub.s32 3, %v711
        %v713 = vrot.slane %v378, %v712
        %v714 = vlaneseq
        %v715 = vshrl.u32 %v714, 7
        %v716 = vsub.s32 4, %v715
        %v717 = vrot.slane %v378, %v716
        %v718 = vlaneseq
        %v719 = vshrl.u32 %v718, 7
        %v720 = vsub.s32 5, %v719
        %v721 = vrot.slane %v378, %v720
        %v722 = vlaneseq
        %v723 = vshrl.u32 %v722, 7
        %v724 = vsub.s32 6, %v723
        %v725 = vrot.slane %v378, %v724
        %v726 = vlaneseq
        %v727 = vshrl.u32 %v726, 7
        %v728 = vsub.s32 7, %v727
        %v729 = vrot.slane %v378, %v728
        %v730 = vlaneseq
        %v731 = vshrl.u32 %v730, 7
        %v732 = vsub.s32 0, %v731
        %v733 = vrot.slane %v380, %v732
        %v734 = vlaneseq
        %v735 = vshrl.u32 %v734, 7
        %v736 = vsub.s32 1, %v735
        %v737 = vrot.slane %v380, %v736
        %v738 = vlaneseq
        %v739 = vshrl.u32 %v738, 7
        %v740 = vsub.s32 2, %v739
        %v741 = vrot.slane %v380, %v740
        %v742 = vlaneseq
        %v743 = vshrl.u32 %v742, 7
        %v744 = vsub.s32 3, %v743
        %v745 = vrot.slane %v380, %v744
        %v746 = vlaneseq
        %v747 = vshrl.u32 %v746, 7
        %v748 = vsub.s32 4, %v747
        %v749 = vrot.slane %v380, %v748
        %v750 = vlaneseq
        %v751 = vshrl.u32 %v750, 7
        %v752 = vsub.s32 5, %v751
        %v753 = vrot.slane %v380, %v752
        %v754 = vlaneseq
        %v755 = vshrl.u32 %v754, 7
        %v756 = vsub.s32 6, %v755
        %v757 = vrot.slane %v380, %v756
        %v758 = vlaneseq
        %v759 = vshrl.u32 %v758, 7
        %v760 = vsub.s32 7, %v759
        %v761 = vrot.slane %v380, %v760
        %v762 = vlaneseq
        %v763 = vshrl.u32 %v762, 7
        %v764 = vsub.s32 0, %v763
        %v765 = vrot.slane %v382, %v764
        %v766 = vlaneseq
        %v767 = vshrl.u32 %v766, 7
        %v768 = vsub.s32 1, %v767
        %v769 = vrot.slane %v382, %v768
        %v770 = vlaneseq
        %v771 = vshrl.u32 %v770, 7
        %v772 = vsub.s32 2, %v771
        %v773 = vrot.slane %v382, %v772
        %v774 = vlaneseq
        %v775 = vshrl.u32 %v774, 7
        %v776 = vsub.s32 3, %v775
        %v777 = vrot.slane %v382, %v776
        %v778 = vlaneseq
        %v779 = vshrl.u32 %v778, 7
        %v780 = vsub.s32 4, %v779
        %v781 = vrot.slane %v382, %v780
        %v782 = vlaneseq
        %v783 = vshrl.u32 %v782, 7
        %v784 = vsub.s32 5, %v783
        %v785 = vrot.slane %v382, %v784
        %v786 = vlaneseq
        %v787 = vshrl.u32 %v786, 7
        %v788 = vsub.s32 6, %v787
        %v789 = vrot.slane %v382, %v788
        %v790 = vlaneseq
        %v791 = vshrl.u32 %v790, 7
        %v792 = vsub.s32 7, %v791
        %v793 = vrot.slane %v382, %v792
        %v794 = vlaneseq
        %v795 = vshrl.u32 %v794, 7
        %v796 = vsub.s32 0, %v795
        %v797 = vrot.slane %v384, %v796
        %v798 = vlaneseq
        %v799 = vshrl.u32 %v798, 7
        %v800 = vsub.s32 1, %v799
        %v801 = vrot.slane %v384, %v800
        %v802 = vlaneseq
        %v803 = vshrl.u32 %v802, 7
        %v804 = vsub.s32 2, %v803
        %v805 = vrot.slane %v384, %v804
        %v806 = vlaneseq
        %v807 = vshrl.u32 %v806, 7
        %v808 = vsub.s32 3, %v807
        %v809 = vrot.slane %v384, %v808
        %v810 = vlaneseq
        %v811 = vshrl.u32 %v810, 7
        %v812 = vsub.s32 4, %v811
        %v813 = vrot.slane %v384, %v812
        %v814 = vlaneseq
        %v815 = vshrl.u32 %v814, 7
        %v816 = vsub.s32 5, %v815
        %v817 = vrot.slane %v384, %v816
        %v818 = vlaneseq
        %v819 = vshrl.u32 %v818, 7
        %v820 = vsub.s32 6, %v819
        %v821 = vrot.slane %v384, %v820
        %v822 = vlaneseq
        %v823 = vshrl.u32 %v822, 7
        %v824 = vsub.s32 7, %v823
        %v825 = vrot.slane %v384, %v824
        %v826 = vlaneseq
        %v827 = vshrl.u32 %v826, 7
        %v828 = vsub.s32 0, %v827
        %v829 = vrot.slane %v386, %v828
        %v830 = vlaneseq
        %v831 = vshrl.u32 %v830, 7
        %v832 = vsub.s32 1, %v831
        %v833 = vrot.slane %v386, %v832
        %v834 = vlaneseq
        %v835 = vshrl.u32 %v834, 7
        %v836 = vsub.s32 2, %v835
        %v837 = vrot.slane %v386, %v836
        %v838 = vlaneseq
        %v839 = vshrl.u32 %v838, 7
        %v840 = vsub.s32 3, %v839
        %v841 = vrot.slane %v386, %v840
        %v842 = vlaneseq
        %v843 = vshrl.u32 %v842, 7
        %v844 = vsub.s32 4, %v843
        %v845 = vrot.slane %v386, %v844
        %v846 = vlaneseq
        %v847 = vshrl.u32 %v846, 7
        %v848 = vsub.s32 5, %v847
        %v849 = vrot.slane %v386, %v848
        %v850 = vlaneseq
        %v851 = vshrl.u32 %v850, 7
        %v852 = vsub.s32 6, %v851
        %v853 = vrot.slane %v386, %v852
        %v854 = vlaneseq
        %v855 = vshrl.u32 %v854, 7
        %v856 = vsub.s32 7, %v855
        %v857 = vrot.slane %v386, %v856
        %v858 = vlaneseq
        %v859 = vshrl.u32 %v858, 7
        %v860 = vsub.s32 0, %v859
        %v861 = vrot.slane %v388, %v860
        %v862 = vlaneseq
        %v863 = vshrl.u32 %v862, 7
        %v864 = vsub.s32 1, %v863
        %v865 = vrot.slane %v388, %v864
        %v866 = vlaneseq
        %v867 = vshrl.u32 %v866, 7
        %v868 = vsub.s32 2, %v867
        %v869 = vrot.slane %v388, %v868
        %v870 = vlaneseq
        %v871 = vshrl.u32 %v870, 7
        %v872 = vsub.s32 3, %v871
        %v873 = vrot.slane %v388, %v872
        %v874 = vlaneseq
        %v875 = vshrl.u32 %v874, 7
        %v876 = vsub.s32 4, %v875
        %v877 = vrot.slane %v388, %v876
        %v878 = vlaneseq
        %v879 = vshrl.u32 %v878, 7
        %v880 = vsub.s32 5, %v879
        %v881 = vrot.slane %v388, %v880
        %v882 = vlaneseq
        %v883 = vshrl.u32 %v882, 7
        %v884 = vsub.s32 6, %v883
        %v885 = vrot.slane %v388, %v884
        %v886 = vlaneseq
        %v887 = vshrl.u32 %v886, 7
        %v888 = vsub.s32 7, %v887
        %v889 = vrot.slane %v388, %v888
        %v890 = vlaneseq
        %v891 = vshrl.u32 %v890, 7
        %v892 = vsub.s32 0, %v891
        %v893 = vrot.slane %v390, %v892
        %v894 = vlaneseq
        %v895 = vshrl.u32 %v894, 7
        %v896 = vsub.s32 1, %v895
        %v897 = vrot.slane %v390, %v896
        %v898 = vlaneseq
        %v899 = vshrl.u32 %v898, 7
        %v900 = vsub.s32 2, %v899
        %v901 = vrot.slane %v390, %v900
        %v902 = vlaneseq
        %v903 = vshrl.u32 %v902, 7
        %v904 = vsub.s32 3, %v903
        %v905 = vrot.slane %v390, %v904
        %v906 = vlaneseq
        %v907 = vshrl.u32 %v906, 7
        %v908 = vsub.s32 4, %v907
        %v909 = vrot.slane %v390, %v908
        %v910 = vlaneseq
        %v911 = vshrl.u32 %v910, 7
        %v912 = vsub.s32 5, %v911
        %v913 = vrot.slane %v390, %v912
        %v914 = vlaneseq
        %v915 = vshrl.u32 %v914, 7
        %v916 = vsub.s32 6, %v915
        %v917 = vrot.slane %v390, %v916
        %v918 = vlaneseq
        %v919 = vshrl.u32 %v918, 7
        %v920 = vsub.s32 7, %v919
        %v921 = vrot.slane %v390, %v920
        %v922 = vcombine.low %v413, %v417
        %v923 = vcombine.low %v421, %v425
        %v924 = vcombine.low %v429, %v433
        %v925 = vcombine.low %v437, %v441
        %v927 = vunpack.c.l.s4 1966171168
        %v928 = vunpack.c.0.s8 %v927
        %v929 = vlaneseq
        %v930 = vshrl.u32 %v929, 7
        %v931 = vsub.s32 %v928, %v930
        %v932 = vrot.slane %v922, %v931
        %v934 = vunpack.c.l.s4 1966171168
        %v935 = vunpack.c.0.s8 %v934
        %v936 = vlaneseq
        %v937 = vshrl.u32 %v936, 7
        %v938 = vsub.s32 %v935, %v937
        %v939 = vrot.slane %v923, %v938
        %v941 = vunpack.c.l.s4 1966171168
        %v942 = vunpack.c.0.s8 %v941
        %v943 = vlaneseq
        %v944 = vshrl.u32 %v943, 7
        %v945 = vsub.s32 %v942, %v944
        %v946 = vrot.slane %v924, %v945
        %v948 = vunpack.c.l.s4 1966171168
        %v949 = vunpack.c.0.s8 %v948
        %v950 = vlaneseq
        %v951 = vshrl.u32 %v950, 7
        %v952 = vsub.s32 %v949, %v951
        %v953 = vrot.slane %v925, %v952
        %v954 = vcombine.low %v932, %v939
        %v955 = vcombine.low %v946, %v953
        %v957 = vunpack.c.l.s4 1966171168
        %v958 = vunpack.c.0.s8 %v957
        %v959 = vlaneseq
        %v960 = vshrl.u32 %v959, 7
        %v961 = vsub.s32 %v958, %v960
        %v962 = vrot.slane %v954, %v961
        %v964 = vunpack.c.l.s4 1966171168
        %v965 = vunpack.c.0.s8 %v964
        %v966 = vlaneseq
        %v967 = vshrl.u32 %v966, 7
        %v968 = vsub.s32 %v965, %v967
        %v969 = vrot.slane %v955, %v968
        %v970 = vcombine.low %v962, %v969
        %v971 = vcombine.low %v445, %v449
        %v972 = vcombine.low %v453, %v457
        %v973 = vcombine.low %v461, %v465
        %v974 = vcombine.low %v469, %v473
        %v976 = vunpack.c.l.s4 1966171168
        %v977 = vunpack.c.0.s8 %v976
        %v978 = vlaneseq
        %v979 = vshrl.u32 %v978, 7
        %v980 = vsub.s32 %v977, %v979
        %v981 = vrot.slane %v971, %v980
        %v983 = vunpack.c.l.s4 1966171168
        %v984 = vunpack.c.0.s8 %v983
        %v985 = vlaneseq
        %v986 = vshrl.u32 %v985, 7
        %v987 = vsub.s32 %v984, %v986
        %v988 = vrot.slane %v972, %v987
        %v990 = vunpack.c.l.s4 1966171168
        %v991 = vunpack.c.0.s8 %v990
        %v992 = vlaneseq
        %v993 = vshrl.u32 %v992, 7
        %v994 = vsub.s32 %v991, %v993
        %v995 = vrot.slane %v973, %v994
        %v997 = vunpack.c.l.s4 1966171168
        %v998 = vunpack.c.0.s8 %v997
        %v999 = vlaneseq
        %v1000 = vshrl.u32 %v999, 7
        %v1001 = vsub.s32 %v998, %v1000
        %v1002 = vrot.slane %v974, %v1001
        %v1003 = vcombine.low %v981, %v988
        %v1004 = vcombine.low %v995, %v1002
        %v1006 = vunpack.c.l.s4 1966171168
        %v1007 = vunpack.c.0.s8 %v1006
        %v1008 = vlaneseq
        %v1009 = vshrl.u32 %v1008, 7
        %v1010 = vsub.s32 %v1007, %v1009
        %v1011 = vrot.slane %v1003, %v1010
        %v1013 = vunpack.c.l.s4 1966171168
        %v1014 = vunpack.c.0.s8 %v1013
        %v1015 = vlaneseq
        %v1016 = vshrl.u32 %v1015, 7
        %v1017 = vsub.s32 %v1014, %v1016
        %v1018 = vrot.slane %v1004, %v1017
        %v1019 = vcombine.low %v1011, %v1018
        %v1020 = vcombine.low %v477, %v481
        %v1021 = vcombine.low %v485, %v489
        %v1022 = vcombine.low %v493, %v497
        %v1023 = vcombine.low %v501, %v505
        %v1025 = vunpack.c.l.s4 1966171168
        %v1026 = vunpack.c.0.s8 %v1025
        %v1027 = vlaneseq
        %v1028 = vshrl.u32 %v1027, 7
        %v1029 = vsub.s32 %v1026, %v1028
        %v1030 = vrot.slane %v1020, %v1029
        %v1032 = vunpack.c.l.s4 1966171168
        %v1033 = vunpack.c.0.s8 %v1032
        %v1034 = vlaneseq
        %v1035 = vshrl.u32 %v1034, 7
        %v1036 = vsub.s32 %v1033, %v1035
        %v1037 = vrot.slane %v1021, %v1036
        %v1039 = vunpack.c.l.s4 1966171168
        %v1040 = vunpack.c.0.s8 %v1039
        %v1041 = vlaneseq
        %v1042 = vshrl.u32 %v1041, 7
        %v1043 = vsub.s32 %v1040, %v1042
        %v1044 = vrot.slane %v1022, %v1043
        %v1046 = vunpack.c.l.s4 1966171168
        %v1047 = vunpack.c.0.s8 %v1046
        %v1048 = vlaneseq
        %v1049 = vshrl.u32 %v1048, 7
        %v1050 = vsub.s32 %v1047, %v1049
        %v1051 = vrot.slane %v1023, %v1050
        %v1052 = vcombine.low %v1030, %v1037
        %v1053 = vcombine.low %v1044, %v1051
        %v1055 = vunpack.c.l.s4 1966171168
        %v1056 = vunpack.c.0.s8 %v1055
        %v1057 = vlaneseq
        %v1058 = vshrl.u32 %v1057, 7
        %v1059 = vsub.s32 %v1056, %v1058
        %v1060 = vrot.slane %v1052, %v1059
        %v1062 = vunpack.c.l.s4 1966171168
        %v1063 = vunpack.c.0.s8 %v1062
        %v1064 = vlaneseq
        %v1065 = vshrl.u32 %v1064, 7
        %v1066 = vsub.s32 %v1063, %v1065
        %v1067 = vrot.slane %v1053, %v1066
        %v1068 = vcombine.low %v1060, %v1067
        %v1069 = vcombine.low %v509, %v513
        %v1070 = vcombine.low %v517, %v521
        %v1071 = vcombine.low %v525, %v529
        %v1072 = vcombine.low %v533, %v537
        %v1074 = vunpack.c.l.s4 1966171168
        %v1075 = vunpack.c.0.s8 %v1074
        %v1076 = vlaneseq
        %v1077 = vshrl.u32 %v1076, 7
        %v1078 = vsub.s32 %v1075, %v1077
        %v1079 = vrot.slane %v1069, %v1078
        %v1081 = vunpack.c.l.s4 1966171168
        %v1082 = vunpack.c.0.s8 %v1081
        %v1083 = vlaneseq
        %v1084 = vshrl.u32 %v1083, 7
        %v1085 = vsub.s32 %v1082, %v1084
        %v1086 = vrot.slane %v1070, %v1085
        %v1088 = vunpack.c.l.s4 1966171168
        %v1089 = vunpack.c.0.s8 %v1088
        %v1090 = vlaneseq
        %v1091 = vshrl.u32 %v1090, 7
        %v1092 = vsub.s32 %v1089, %v1091
        %v1093 = vrot.slane %v1071, %v1092
        %v1095 = vunpack.c.l.s4 1966171168
        %v1096 = vunpack.c.0.s8 %v1095
        %v1097 = vlaneseq
        %v1098 = vshrl.u32 %v1097, 7
        %v1099 = vsub.s32 %v1096, %v1098
        %v1100 = vrot.slane %v1072, %v1099
        %v1101 = vcombine.low %v1079, %v1086
        %v1102 = vcombine.low %v1093, %v1100
        %v1104 = vunpack.c.l.s4 1966171168
        %v1105 = vunpack.c.0.s8 %v1104
        %v1106 = vlaneseq
        %v1107 = vshrl.u32 %v1106, 7
        %v1108 = vsub.s32 %v1105, %v1107
        %v1109 = vrot.slane %v1101, %v1108
        %v1111 = vunpack.c.l.s4 1966171168
        %v1112 = vunpack.c.0.s8 %v1111
        %v1113 = vlaneseq
        %v1114 = vshrl.u32 %v1113, 7
        %v1115 = vsub.s32 %v1112, %v1114
        %v1116 = vrot.slane %v1102, %v1115
        %v1117 = vcombine.low %v1109, %v1116
        %v1118 = vcombine.low %v541, %v545
        %v1119 = vcombine.low %v549, %v553
        %v1120 = vcombine.low %v557, %v561
        %v1121 = vcombine.low %v565, %v569
        %v1123 = vunpack.c.l.s4 1966171168
        %v1124 = vunpack.c.0.s8 %v1123
        %v1125 = vlaneseq
        %v1126 = vshrl.u32 %v1125, 7
        %v1127 = vsub.s32 %v1124, %v1126
        %v1128 = vrot.slane %v1118, %v1127
        %v1130 = vunpack.c.l.s4 1966171168
        %v1131 = vunpack.c.0.s8 %v1130
        %v1132 = vlaneseq
        %v1133 = vshrl.u32 %v1132, 7
        %v1134 = vsub.s32 %v1131, %v1133
        %v1135 = vrot.slane %v1119, %v1134
        %v1137 = vunpack.c.l.s4 1966171168
        %v1138 = vunpack.c.0.s8 %v1137
        %v1139 = vlaneseq
        %v1140 = vshrl.u32 %v1139, 7
        %v1141 = vsub.s32 %v1138, %v1140
        %v1142 = vrot.slane %v1120, %v1141
        %v1144 = vunpack.c.l.s4 1966171168
        %v1145 = vunpack.c.0.s8 %v1144
        %v1146 = vlaneseq
        %v1147 = vshrl.u32 %v1146, 7
        %v1148 = vsub.s32 %v1145, %v1147
        %v1149 = vrot.slane %v1121, %v1148
        %v1150 = vcombine.low %v1128, %v1135
        %v1151 = vcombine.low %v1142, %v1149
        %v1153 = vunpack.c.l.s4 1966171168
        %v1154 = vunpack.c.0.s8 %v1153
        %v1155 = vlaneseq
        %v1156 = vshrl.u32 %v1155, 7
        %v1157 = vsub.s32 %v1154, %v1156
        %v1158 = vrot.slane %v1150, %v1157
        %v1160 = vunpack.c.l.s4 1966171168
        %v1161 = vunpack.c.0.s8 %v1160
        %v1162 = vlaneseq
        %v1163 = vshrl.u32 %v1162, 7
        %v1164 = vsub.s32 %v1161, %v1163
        %v1165 = vrot.slane %v1151, %v1164
        %v1166 = vcombine.low %v1158, %v1165
        %v1167 = vcombine.low %v573, %v577
        %v1168 = vcombine.low %v581, %v585
        %v1169 = vcombine.low %v589, %v593
        %v1170 = vcombine.low %v597, %v601
        %v1172 = vunpack.c.l.s4 1966171168
        %v1173 = vunpack.c.0.s8 %v1172
        %v1174 = vlaneseq
        %v1175 = vshrl.u32 %v1174, 7
        %v1176 = vsub.s32 %v1173, %v1175
        %v1177 = vrot.slane %v1167, %v1176
        %v1179 = vunpack.c.l.s4 1966171168
        %v1180 = vunpack.c.0.s8 %v1179
        %v1181 = vlaneseq
        %v1182 = vshrl.u32 %v1181, 7
        %v1183 = vsub.s32 %v1180, %v1182
        %v1184 = vrot.slane %v1168, %v1183
        %v1186 = vunpack.c.l.s4 1966171168
        %v1187 = vunpack.c.0.s8 %v1186
        %v1188 = vlaneseq
        %v1189 = vshrl.u32 %v1188, 7
        %v1190 = vsub.s32 %v1187, %v1189
        %v1191 = vrot.slane %v1169, %v1190
        %v1193 = vunpack.c.l.s4 1966171168
        %v1194 = vunpack.c.0.s8 %v1193
        %v1195 = vlaneseq
        %v1196 = vshrl.u32 %v1195, 7
        %v1197 = vsub.s32 %v1194, %v1196
        %v1198 = vrot.slane %v1170, %v1197
        %v1199 = vcombine.low %v1177, %v1184
        %v1200 = vcombine.low %v1191, %v1198
        %v1202 = vunpack.c.l.s4 1966171168
        %v1203 = vunpack.c.0.s8 %v1202
        %v1204 = vlaneseq
        %v1205 = vshrl.u32 %v1204, 7
        %v1206 = vsub.s32 %v1203, %v1205
        %v1207 = vrot.slane %v1199, %v1206
        %v1209 = vunpack.c.l.s4 1966171168
        %v1210 = vunpack.c.0.s8 %v1209
        %v1211 = vlaneseq
        %v1212 = vshrl.u32 %v1211, 7
        %v1213 = vsub.s32 %v1210, %v1212
        %v1214 = vrot.slane %v1200, %v1213
        %v1215 = vcombine.low %v1207, %v1214
        %v1216 = vcombine.low %v605, %v609
        %v1217 = vcombine.low %v613, %v617
        %v1218 = vcombine.low %v621, %v625
        %v1219 = vcombine.low %v629, %v633
        %v1221 = vunpack.c.l.s4 1966171168
        %v1222 = vunpack.c.0.s8 %v1221
        %v1223 = vlaneseq
        %v1224 = vshrl.u32 %v1223, 7
        %v1225 = vsub.s32 %v1222, %v1224
        %v1226 = vrot.slane %v1216, %v1225
        %v1228 = vunpack.c.l.s4 1966171168
        %v1229 = vunpack.c.0.s8 %v1228
        %v1230 = vlaneseq
        %v1231 = vshrl.u32 %v1230, 7
        %v1232 = vsub.s32 %v1229, %v1231
        %v1233 = vrot.slane %v1217, %v1232
        %v1235 = vunpack.c.l.s4 1966171168
        %v1236 = vunpack.c.0.s8 %v1235
        %v1237 = vlaneseq
        %v1238 = vshrl.u32 %v1237, 7
        %v1239 = vsub.s32 %v1236, %v1238
        %v1240 = vrot.slane %v1218, %v1239
        %v1242 = vunpack.c.l.s4 1966171168
        %v1243 = vunpack.c.0.s8 %v1242
        %v1244 = vlaneseq
        %v1245 = vshrl.u32 %v1244, 7
        %v1246 = vsub.s32 %v1243, %v1245
        %v1247 = vrot.slane %v1219, %v1246
        %v1248 = vcombine.low %v1226, %v1233
        %v1249 = vcombine.low %v1240, %v1247
        %v1251 = vunpack.c.l.s4 1966171168
        %v1252 = vunpack.c.0.s8 %v1251
        %v1253 = vlaneseq
        %v1254 = vshrl.u32 %v1253, 7
        %v1255 = vsub.s32 %v1252, %v1254
        %v1256 = vrot.slane %v1248, %v1255
        %v1258 = vunpack.c.l.s4 1966171168
        %v1259 = vunpack.c.0.s8 %v1258
        %v1260 = vlaneseq
        %v1261 = vshrl.u32 %v1260, 7
        %v1262 = vsub.s32 %v1259, %v1261
        %v1263 = vrot.slane %v1249, %v1262
        %v1264 = vcombine.low %v1256, %v1263
        %v1265 = vcombine.low %v637, %v641
        %v1266 = vcombine.low %v645, %v649
        %v1267 = vcombine.low %v653, %v657
        %v1268 = vcombine.low %v661, %v665
        %v1270 = vunpack.c.l.s4 1966171168
        %v1271 = vunpack.c.0.s8 %v1270
        %v1272 = vlaneseq
        %v1273 = vshrl.u32 %v1272, 7
        %v1274 = vsub.s32 %v1271, %v1273
        %v1275 = vrot.slane %v1265, %v1274
        %v1277 = vunpack.c.l.s4 1966171168
        %v1278 = vunpack.c.0.s8 %v1277
        %v1279 = vlaneseq
        %v1280 = vshrl.u32 %v1279, 7
        %v1281 = vsub.s32 %v1278, %v1280
        %v1282 = vrot.slane %v1266, %v1281
        %v1284 = vunpack.c.l.s4 1966171168
        %v1285 = vunpack.c.0.s8 %v1284
        %v1286 = vlaneseq
        %v1287 = vshrl.u32 %v1286, 7
        %v1288 = vsub.s32 %v1285, %v1287
        %v1289 = vrot.slane %v1267, %v1288
        %v1291 = vunpack.c.l.s4 1966171168
        %v1292 = vunpack.c.0.s8 %v1291
        %v1293 = vlaneseq
        %v1294 = vshrl.u32 %v1293, 7
        %v1295 = vsub.s32 %v1292, %v1294
        %v1296 = vrot.slane %v1268, %v1295
        %v1297 = vcombine.low %v1275, %v1282
        %v1298 = vcombine.low %v1289, %v1296
        %v1300 = vunpack.c.l.s4 1966171168
        %v1301 = vunpack.c.0.s8 %v1300
        %v1302 = vlaneseq
        %v1303 = vshrl.u32 %v1302, 7
        %v1304 = vsub.s32 %v1301, %v1303
        %v1305 = vrot.slane %v1297, %v1304
        %v1307 = vunpack.c.l.s4 1966171168
        %v1308 = vunpack.c.0.s8 %v1307
        %v1309 = vlaneseq
        %v1310 = vshrl.u32 %v1309, 7
        %v1311 = vsub.s32 %v1308, %v1310
        %v1312 = vrot.slane %v1298, %v1311
        %v1313 = vcombine.low %v1305, %v1312
        %v1314 = vcombine.low %v669, %v673
        %v1315 = vcombine.low %v677, %v681
        %v1316 = vcombine.low %v685, %v689
        %v1317 = vcombine.low %v693, %v697
        %v1319 = vunpack.c.l.s4 1966171168
        %v1320 = vunpack.c.0.s8 %v1319
        %v1321 = vlaneseq
        %v1322 = vshrl.u32 %v1321, 7
        %v1323 = vsub.s32 %v1320, %v1322
        %v1324 = vrot.slane %v1314, %v1323
        %v1326 = vunpack.c.l.s4 1966171168
        %v1327 = vunpack.c.0.s8 %v1326
        %v1328 = vlaneseq
        %v1329 = vshrl.u32 %v1328, 7
        %v1330 = vsub.s32 %v1327, %v1329
        %v1331 = vrot.slane %v1315, %v1330
        %v1333 = vunpack.c.l.s4 1966171168
        %v1334 = vunpack.c.0.s8 %v1333
        %v1335 = vlaneseq
        %v1336 = vshrl.u32 %v1335, 7
        %v1337 = vsub.s32 %v1334, %v1336
        %v1338 = vrot.slane %v1316, %v1337
        %v1340 = vunpack.c.l.s4 1966171168
        %v1341 = vunpack.c.0.s8 %v1340
        %v1342 = vlaneseq
        %v1343 = vshrl.u32 %v1342, 7
        %v1344 = vsub.s32 %v1341, %v1343
        %v1345 = vrot.slane %v1317, %v1344
        %v1346 = vcombine.low %v1324, %v1331
        %v1347 = vcombine.low %v1338, %v1345
        %v1349 = vunpack.c.l.s4 1966171168
        %v1350 = vunpack.c.0.s8 %v1349
        %v1351 = vlaneseq
        %v1352 = vshrl.u32 %v1351, 7
        %v1353 = vsub.s32 %v1350, %v1352
        %v1354 = vrot.slane %v1346, %v1353
        %v1356 = vunpack.c.l.s4 1966171168
        %v1357 = vunpack.c.0.s8 %v1356
        %v1358 = vlaneseq
        %v1359 = vshrl.u32 %v1358, 7
        %v1360 = vsub.s32 %v1357, %v1359
        %v1361 = vrot.slane %v1347, %v1360
        %v1362 = vcombine.low %v1354, %v1361
        %v1363 = vcombine.low %v701, %v705
        %v1364 = vcombine.low %v709, %v713
        %v1365 = vcombine.low %v717, %v721
        %v1366 = vcombine.low %v725, %v729
        %v1368 = vunpack.c.l.s4 1966171168
        %v1369 = vunpack.c.0.s8 %v1368
        %v1370 = vlaneseq
        %v1371 = vshrl.u32 %v1370, 7
        %v1372 = vsub.s32 %v1369, %v1371
        %v1373 = vrot.slane %v1363, %v1372
        %v1375 = vunpack.c.l.s4 1966171168
        %v1376 = vunpack.c.0.s8 %v1375
        %v1377 = vlaneseq
        %v1378 = vshrl.u32 %v1377, 7
        %v1379 = vsub.s32 %v1376, %v1378
        %v1380 = vrot.slane %v1364, %v1379
        %v1382 = vunpack.c.l.s4 1966171168
        %v1383 = vunpack.c.0.s8 %v1382
        %v1384 = vlaneseq
        %v1385 = vshrl.u32 %v1384, 7
        %v1386 = vsub.s32 %v1383, %v1385
        %v1387 = vrot.slane %v1365, %v1386
        %v1389 = vunpack.c.l.s4 1966171168
        %v1390 = vunpack.c.0.s8 %v1389
        %v1391 = vlaneseq
        %v1392 = vshrl.u32 %v1391, 7
        %v1393 = vsub.s32 %v1390, %v1392
        %v1394 = vrot.slane %v1366, %v1393
        %v1395 = vcombine.low %v1373, %v1380
        %v1396 = vcombine.low %v1387, %v1394
        %v1398 = vunpack.c.l.s4 1966171168
        %v1399 = vunpack.c.0.s8 %v1398
        %v1400 = vlaneseq
        %v1401 = vshrl.u32 %v1400, 7
        %v1402 = vsub.s32 %v1399, %v1401
        %v1403 = vrot.slane %v1395, %v1402
        %v1405 = vunpack.c.l.s4 1966171168
        %v1406 = vunpack.c.0.s8 %v1405
        %v1407 = vlaneseq
        %v1408 = vshrl.u32 %v1407, 7
        %v1409 = vsub.s32 %v1406, %v1408
        %v1410 = vrot.slane %v1396, %v1409
        %v1411 = vcombine.low %v1403, %v1410
        %v1412 = vcombine.low %v733, %v737
        %v1413 = vcombine.low %v741, %v745
        %v1414 = vcombine.low %v749, %v753
        %v1415 = vcombine.low %v757, %v761
        %v1417 = vunpack.c.l.s4 1966171168
        %v1418 = vunpack.c.0.s8 %v1417
        %v1419 = vlaneseq
        %v1420 = vshrl.u32 %v1419, 7
        %v1421 = vsub.s32 %v1418, %v1420
        %v1422 = vrot.slane %v1412, %v1421
        %v1424 = vunpack.c.l.s4 1966171168
        %v1425 = vunpack.c.0.s8 %v1424
        %v1426 = vlaneseq
        %v1427 = vshrl.u32 %v1426, 7
        %v1428 = vsub.s32 %v1425, %v1427
        %v1429 = vrot.slane %v1413, %v1428
        %v1431 = vunpack.c.l.s4 1966171168
        %v1432 = vunpack.c.0.s8 %v1431
        %v1433 = vlaneseq
        %v1434 = vshrl.u32 %v1433, 7
        %v1435 = vsub.s32 %v1432, %v1434
        %v1436 = vrot.slane %v1414, %v1435
        %v1438 = vunpack.c.l.s4 1966171168
        %v1439 = vunpack.c.0.s8 %v1438
        %v1440 = vlaneseq
        %v1441 = vshrl.u32 %v1440, 7
        %v1442 = vsub.s32 %v1439, %v1441
        %v1443 = vrot.slane %v1415, %v1442
        %v1444 = vcombine.low %v1422, %v1429
        %v1445 = vcombine.low %v1436, %v1443
        %v1447 = vunpack.c.l.s4 1966171168
        %v1448 = vunpack.c.0.s8 %v1447
        %v1449 = vlaneseq
        %v1450 = vshrl.u32 %v1449, 7
        %v1451 = vsub.s32 %v1448, %v1450
        %v1452 = vrot.slane %v1444, %v1451
        %v1454 = vunpack.c.l.s4 1966171168
        %v1455 = vunpack.c.0.s8 %v1454
        %v1456 = vlaneseq
        %v1457 = vshrl.u32 %v1456, 7
        %v1458 = vsub.s32 %v1455, %v1457
        %v1459 = vrot.slane %v1445, %v1458
        %v1460 = vcombine.low %v1452, %v1459
        %v1461 = vcombine.low %v765, %v769
        %v1462 = vcombine.low %v773, %v777
        %v1463 = vcombine.low %v781, %v785
        %v1464 = vcombine.low %v789, %v793
        %v1466 = vunpack.c.l.s4 1966171168
        %v1467 = vunpack.c.0.s8 %v1466
        %v1468 = vlaneseq
        %v1469 = vshrl.u32 %v1468, 7
        %v1470 = vsub.s32 %v1467, %v1469
        %v1471 = vrot.slane %v1461, %v1470
        %v1473 = vunpack.c.l.s4 1966171168
        %v1474 = vunpack.c.0.s8 %v1473
        %v1475 = vlaneseq
        %v1476 = vshrl.u32 %v1475, 7
        %v1477 = vsub.s32 %v1474, %v1476
        %v1478 = vrot.slane %v1462, %v1477
        %v1480 = vunpack.c.l.s4 1966171168
        %v1481 = vunpack.c.0.s8 %v1480
        %v1482 = vlaneseq
        %v1483 = vshrl.u32 %v1482, 7
        %v1484 = vsub.s32 %v1481, %v1483
        %v1485 = vrot.slane %v1463, %v1484
        %v1487 = vunpack.c.l.s4 1966171168
        %v1488 = vunpack.c.0.s8 %v1487
        %v1489 = vlaneseq
        %v1490 = vshrl.u32 %v1489, 7
        %v1491 = vsub.s32 %v1488, %v1490
        %v1492 = vrot.slane %v1464, %v1491
        %v1493 = vcombine.low %v1471, %v1478
        %v1494 = vcombine.low %v1485, %v1492
        %v1496 = vunpack.c.l.s4 1966171168
        %v1497 = vunpack.c.0.s8 %v1496
        %v1498 = vlaneseq
        %v1499 = vshrl.u32 %v1498, 7
        %v1500 = vsub.s32 %v1497, %v1499
        %v1501 = vrot.slane %v1493, %v1500
        %v1503 = vunpack.c.l.s4 1966171168
        %v1504 = vunpack.c.0.s8 %v1503
        %v1505 = vlaneseq
        %v1506 = vshrl.u32 %v1505, 7
        %v1507 = vsub.s32 %v1504, %v1506
        %v1508 = vrot.slane %v1494, %v1507
        %v1509 = vcombine.low %v1501, %v1508
        %v1510 = vcombine.low %v797, %v801
        %v1511 = vcombine.low %v805, %v809
        %v1512 = vcombine.low %v813, %v817
        %v1513 = vcombine.low %v821, %v825
        %v1515 = vunpack.c.l.s4 1966171168
        %v1516 = vunpack.c.0.s8 %v1515
        %v1517 = vlaneseq
        %v1518 = vshrl.u32 %v1517, 7
        %v1519 = vsub.s32 %v1516, %v1518
        %v1520 = vrot.slane %v1510, %v1519
        %v1522 = vunpack.c.l.s4 1966171168
        %v1523 = vunpack.c.0.s8 %v1522
        %v1524 = vlaneseq
        %v1525 = vshrl.u32 %v1524, 7
        %v1526 = vsub.s32 %v1523, %v1525
        %v1527 = vrot.slane %v1511, %v1526
        %v1529 = vunpack.c.l.s4 1966171168
        %v1530 = vunpack.c.0.s8 %v1529
        %v1531 = vlaneseq
        %v1532 = vshrl.u32 %v1531, 7
        %v1533 = vsub.s32 %v1530, %v1532
        %v1534 = vrot.slane %v1512, %v1533
        %v1536 = vunpack.c.l.s4 1966171168
        %v1537 = vunpack.c.0.s8 %v1536
        %v1538 = vlaneseq
        %v1539 = vshrl.u32 %v1538, 7
        %v1540 = vsub.s32 %v1537, %v1539
        %v1541 = vrot.slane %v1513, %v1540
        %v1542 = vcombine.low %v1520, %v1527
        %v1543 = vcombine.low %v1534, %v1541
        %v1545 = vunpack.c.l.s4 1966171168
        %v1546 = vunpack.c.0.s8 %v1545
        %v1547 = vlaneseq
        %v1548 = vshrl.u32 %v1547, 7
        %v1549 = vsub.s32 %v1546, %v1548
        %v1550 = vrot.slane %v1542, %v1549
        %v1552 = vunpack.c.l.s4 1966171168
        %v1553 = vunpack.c.0.s8 %v1552
        %v1554 = vlaneseq
        %v1555 = vshrl.u32 %v1554, 7
        %v1556 = vsub.s32 %v1553, %v1555
        %v1557 = vrot.slane %v1543, %v1556
        %v1558 = vcombine.low %v1550, %v1557
        %v1559 = vcombine.low %v829, %v833
        %v1560 = vcombine.low %v837, %v841
        %v1561 = vcombine.low %v845, %v849
        %v1562 = vcombine.low %v853, %v857
        %v1564 = vunpack.c.l.s4 1966171168
        %v1565 = vunpack.c.0.s8 %v1564
        %v1566 = vlaneseq
        %v1567 = vshrl.u32 %v1566, 7
        %v1568 = vsub.s32 %v1565, %v1567
        %v1569 = vrot.slane %v1559, %v1568
        %v1571 = vunpack.c.l.s4 1966171168
        %v1572 = vunpack.c.0.s8 %v1571
        %v1573 = vlaneseq
        %v1574 = vshrl.u32 %v1573, 7
        %v1575 = vsub.s32 %v1572, %v1574
        %v1576 = vrot.slane %v1560, %v1575
        %v1578 = vunpack.c.l.s4 1966171168
        %v1579 = vunpack.c.0.s8 %v1578
        %v1580 = vlaneseq
        %v1581 = vshrl.u32 %v1580, 7
        %v1582 = vsub.s32 %v1579, %v1581
        %v1583 = vrot.slane %v1561, %v1582
        %v1585 = vunpack.c.l.s4 1966171168
        %v1586 = vunpack.c.0.s8 %v1585
        %v1587 = vlaneseq
        %v1588 = vshrl.u32 %v1587, 7
        %v1589 = vsub.s32 %v1586, %v1588
        %v1590 = vrot.slane %v1562, %v1589
        %v1591 = vcombine.low %v1569, %v1576
        %v1592 = vcombine.low %v1583, %v1590
        %v1594 = vunpack.c.l.s4 1966171168
        %v1595 = vunpack.c.0.s8 %v1594
        %v1596 = vlaneseq
        %v1597 = vshrl.u32 %v1596, 7
        %v1598 = vsub.s32 %v1595, %v1597
        %v1599 = vrot.slane %v1591, %v1598
        %v1601 = vunpack.c.l.s4 1966171168
        %v1602 = vunpack.c.0.s8 %v1601
        %v1603 = vlaneseq
        %v1604 = vshrl.u32 %v1603, 7
        %v1605 = vsub.s32 %v1602, %v1604
        %v1606 = vrot.slane %v1592, %v1605
        %v1607 = vcombine.low %v1599, %v1606
        %v1608 = vcombine.low %v861, %v865
        %v1609 = vcombine.low %v869, %v873
        %v1610 = vcombine.low %v877, %v881
        %v1611 = vcombine.low %v885, %v889
        %v1613 = vunpack.c.l.s4 1966171168
        %v1614 = vunpack.c.0.s8 %v1613
        %v1615 = vlaneseq
        %v1616 = vshrl.u32 %v1615, 7
        %v1617 = vsub.s32 %v1614, %v1616
        %v1618 = vrot.slane %v1608, %v1617
        %v1620 = vunpack.c.l.s4 1966171168
        %v1621 = vunpack.c.0.s8 %v1620
        %v1622 = vlaneseq
        %v1623 = vshrl.u32 %v1622, 7
        %v1624 = vsub.s32 %v1621, %v1623
        %v1625 = vrot.slane %v1609, %v1624
        %v1627 = vunpack.c.l.s4 1966171168
        %v1628 = vunpack.c.0.s8 %v1627
        %v1629 = vlaneseq
        %v1630 = vshrl.u32 %v1629, 7
        %v1631 = vsub.s32 %v1628, %v1630
        %v1632 = vrot.slane %v1610, %v1631
        %v1634 = vunpack.c.l.s4 1966171168
        %v1635 = vunpack.c.0.s8 %v1634
        %v1636 = vlaneseq
        %v1637 = vshrl.u32 %v1636, 7
        %v1638 = vsub.s32 %v1635, %v1637
        %v1639 = vrot.slane %v1611, %v1638
        %v1640 = vcombine.low %v1618, %v1625
        %v1641 = vcombine.low %v1632, %v1639
        %v1643 = vunpack.c.l.s4 1966171168
        %v1644 = vunpack.c.0.s8 %v1643
        %v1645 = vlaneseq
        %v1646 = vshrl.u32 %v1645, 7
        %v1647 = vsub.s32 %v1644, %v1646
        %v1648 = vrot.slane %v1640, %v1647
        %v1650 = vunpack.c.l.s4 1966171168
        %v1651 = vunpack.c.0.s8 %v1650
        %v1652 = vlaneseq
        %v1653 = vshrl.u32 %v1652, 7
        %v1654 = vsub.s32 %v1651, %v1653
        %v1655 = vrot.slane %v1641, %v1654
        %v1656 = vcombine.low %v1648, %v1655
        %v1657 = vcombine.low %v893, %v897
        %v1658 = vcombine.low %v901, %v905
        %v1659 = vcombine.low %v909, %v913
        %v1660 = vcombine.low %v917, %v921
        %v1662 = vunpack.c.l.s4 1966171168
        %v1663 = vunpack.c.0.s8 %v1662
        %v1664 = vlaneseq
        %v1665 = vshrl.u32 %v1664, 7
        %v1666 = vsub.s32 %v1663, %v1665
        %v1667 = vrot.slane %v1657, %v1666
        %v1669 = vunpack.c.l.s4 1966171168
        %v1670 = vunpack.c.0.s8 %v1669
        %v1671 = vlaneseq
        %v1672 = vshrl.u32 %v1671, 7
        %v1673 = vsub.s32 %v1670, %v1672
        %v1674 = vrot.slane %v1658, %v1673
        %v1676 = vunpack.c.l.s4 1966171168
        %v1677 = vunpack.c.0.s8 %v1676
        %v1678 = vlaneseq
        %v1679 = vshrl.u32 %v1678, 7
        %v1680 = vsub.s32 %v1677, %v1679
        %v1681 = vrot.slane %v1659, %v1680
        %v1683 = vunpack.c.l.s4 1966171168
        %v1684 = vunpack.c.0.s8 %v1683
        %v1685 = vlaneseq
        %v1686 = vshrl.u32 %v1685, 7
        %v1687 = vsub.s32 %v1684, %v1686
        %v1688 = vrot.slane %v1660, %v1687
        %v1689 = vcombine.low %v1667, %v1674
        %v1690 = vcombine.low %v1681, %v1688
        %v1692 = vunpack.c.l.s4 1966171168
        %v1693 = vunpack.c.0.s8 %v1692
        %v1694 = vlaneseq
        %v1695 = vshrl.u32 %v1694, 7
        %v1696 = vsub.s32 %v1693, %v1695
        %v1697 = vrot.slane %v1689, %v1696
        %v1699 = vunpack.c.l.s4 1966171168
        %v1700 = vunpack.c.0.s8 %v1699
        %v1701 = vlaneseq
        %v1702 = vshrl.u32 %v1701, 7
        %v1703 = vsub.s32 %v1700, %v1702
        %v1704 = vrot.slane %v1690, %v1703
        %v1705 = vcombine.low %v1697, %v1704
        %1706 = vset.pattern.permute.xlu0 0
        %1707 = vperm.xlu0 %1706, %v970
        %v1708 = vpop.permute.xlu0 %1707
        %1709 = vset.pattern.permute.xlu0 0
        %1710 = vperm.xlu0 %1709, %v1019
        %v1711 = vpop.permute.xlu0 %1710
        %1712 = vset.pattern.permute.xlu0 0
        %1713 = vperm.xlu0 %1712, %v1068
        %v1714 = vpop.permute.xlu0 %1713
        %1715 = vset.pattern.permute.xlu0 0
        %1716 = vperm.xlu0 %1715, %v1117
        %v1717 = vpop.permute.xlu0 %1716
        %1718 = vset.pattern.permute.xlu0 0
        %1719 = vperm.xlu0 %1718, %v1166
        %v1720 = vpop.permute.xlu0 %1719
        %1721 = vset.pattern.permute.xlu0 0
        %1722 = vperm.xlu0 %1721, %v1215
        %v1723 = vpop.permute.xlu0 %1722
        %1724 = vset.pattern.permute.xlu0 0
        %1725 = vperm.xlu0 %1724, %v1264
        %v1726 = vpop.permute.xlu0 %1725
        %1727 = vset.pattern.permute.xlu0 0
        %1728 = vperm.xlu0 %1727, %v1313
        %v1729 = vpop.permute.xlu0 %1728
        %1730 = vset.pattern.permute.xlu0 0
        %1731 = vperm.xlu0 %1730, %v1362
        %v1732 = vpop.permute.xlu0 %1731
        %1733 = vset.pattern.permute.xlu0 0
        %1734 = vperm.xlu0 %1733, %v1411
        %v1735 = vpop.permute.xlu0 %1734
        %1736 = vset.pattern.permute.xlu0 0
        %1737 = vperm.xlu0 %1736, %v1460
        %v1738 = vpop.permute.xlu0 %1737
        %1739 = vset.pattern.permute.xlu0 0
        %1740 = vperm.xlu0 %1739, %v1509
        %v1741 = vpop.permute.xlu0 %1740
        %1742 = vset.pattern.permute.xlu0 0
        %1743 = vperm.xlu0 %1742, %v1558
        %v1744 = vpop.permute.xlu0 %1743
        %1745 = vset.pattern.permute.xlu0 0
        %1746 = vperm.xlu0 %1745, %v1607
        %v1747 = vpop.permute.xlu0 %1746
        %1748 = vset.pattern.permute.xlu0 0
        %1749 = vperm.xlu0 %1748, %v1656
        %v1750 = vpop.permute.xlu0 %1749
        %1751 = vset.pattern.permute.xlu0 0
        %1752 = vperm.xlu0 %1751, %v1705
        %v1753 = vpop.permute.xlu0 %1752
        %v1754 = vlaneseq
        %v1755 = vand.u32 %v1754, 127
        %v1756 = vlaneseq
        %v1757 = vshrl.u32 %v1756, 7
        %v1758 = vsub.s32 %v1755, %v1757
        %v1759 = vrot.slane %v1708, %v1758
        %v1760 = vadd.s32 %v1755, 4294967288
        %v1761 = vlaneseq
        %v1762 = vshrl.u32 %v1761, 7
        %v1763 = vsub.s32 %v1760, %v1762
        %v1764 = vrot.slane %v1711, %v1763
        %vm1765 = vcmask 130112
        %v1766 = vsel %vm1765, %v1764, %v1759
        %v1767 = vadd.s32 %v1755, 4294967280
        %v1768 = vlaneseq
        %v1769 = vshrl.u32 %v1768, 7
        %v1770 = vsub.s32 %v1767, %v1769
        %v1771 = vrot.slane %v1714, %v1770
        %vm1772 = vcmask 195712
        %v1773 = vsel %vm1772, %v1771, %v1766
        %v1774 = vadd.s32 %v1755, 4294967272
        %v1775 = vlaneseq
        %v1776 = vshrl.u32 %v1775, 7
        %v1777 = vsub.s32 %v1774, %v1776
        %v1778 = vrot.slane %v1717, %v1777
        %vm1779 = vcmask 261312
        %v1780 = vsel %vm1779, %v1778, %v1773
        %v1781 = vadd.s32 %v1755, 4294967264
        %v1782 = vlaneseq
        %v1783 = vshrl.u32 %v1782, 7
        %v1784 = vsub.s32 %v1781, %v1783
        %v1785 = vrot.slane %v1720, %v1784
        %vm1786 = vcmask 326912
        %v1787 = vsel %vm1786, %v1785, %v1780
        %v1788 = vadd.s32 %v1755, 4294967256
        %v1789 = vlaneseq
        %v1790 = vshrl.u32 %v1789, 7
        %v1791 = vsub.s32 %v1788, %v1790
        %v1792 = vrot.slane %v1723, %v1791
        %vm1793 = vcmask 392512
        %v1794 = vsel %vm1793, %v1792, %v1787
        %v1795 = vadd.s32 %v1755, 4294967248
        %v1796 = vlaneseq
        %v1797 = vshrl.u32 %v1796, 7
        %v1798 = vsub.s32 %v1795, %v1797
        %v1799 = vrot.slane %v1726, %v1798
        %vm1800 = vcmask 458112
        %v1801 = vsel %vm1800, %v1799, %v1794
        %v1802 = vadd.s32 %v1755, 4294967240
        %v1803 = vlaneseq
        %v1804 = vshrl.u32 %v1803, 7
        %v1805 = vsub.s32 %v1802, %v1804
        %v1806 = vrot.slane %v1729, %v1805
        %vm1807 = vcmask 523712
        %v1808 = vsel %vm1807, %v1806, %v1801
        %v1809 = vadd.s32 %v1755, 4294967232
        %v1810 = vlaneseq
        %v1811 = vshrl.u32 %v1810, 7
        %v1812 = vsub.s32 %v1809, %v1811
        %v1813 = vrot.slane %v1732, %v1812
        %vm1814 = vcmask 589312
        %v1815 = vsel %vm1814, %v1813, %v1808
        %v1816 = vadd.s32 %v1755, 4294967224
        %v1817 = vlaneseq
        %v1818 = vshrl.u32 %v1817, 7
        %v1819 = vsub.s32 %v1816, %v1818
        %v1820 = vrot.slane %v1735, %v1819
        %vm1821 = vcmask 654912
        %v1822 = vsel %vm1821, %v1820, %v1815
        %v1823 = vadd.s32 %v1755, 4294967216
        %v1824 = vlaneseq
        %v1825 = vshrl.u32 %v1824, 7
        %v1826 = vsub.s32 %v1823, %v1825
        %v1827 = vrot.slane %v1738, %v1826
        %vm1828 = vcmask 720512
        %v1829 = vsel %vm1828, %v1827, %v1822
        %v1830 = vadd.s32 %v1755, 4294967208
        %v1831 = vlaneseq
        %v1832 = vshrl.u32 %v1831, 7
        %v1833 = vsub.s32 %v1830, %v1832
        %v1834 = vrot.slane %v1741, %v1833
        %vm1835 = vcmask 786112
        %v1836 = vsel %vm1835, %v1834, %v1829
        %v1837 = vadd.s32 %v1755, 4294967200
        %v1838 = vlaneseq
        %v1839 = vshrl.u32 %v1838, 7
        %v1840 = vsub.s32 %v1837, %v1839
        %v1841 = vrot.slane %v1744, %v1840
        %vm1842 = vcmask 851712
        %v1843 = vsel %vm1842, %v1841, %v1836
        %v1844 = vadd.s32 %v1755, 4294967192
        %v1845 = vlaneseq
        %v1846 = vshrl.u32 %v1845, 7
        %v1847 = vsub.s32 %v1844, %v1846
        %v1848 = vrot.slane %v1747, %v1847
        %vm1849 = vcmask 917312
        %v1850 = vsel %vm1849, %v1848, %v1843
        %v1851 = vadd.s32 %v1755, 4294967184
        %v1852 = vlaneseq
        %v1853 = vshrl.u32 %v1852, 7
        %v1854 = vsub.s32 %v1851, %v1853
        %v1855 = vrot.slane %v1750, %v1854
        %vm1856 = vcmask 982912
        %v1857 = vsel %vm1856, %v1855, %v1850
        %v1858 = vadd.s32 %v1755, 4294967176
        %v1859 = vlaneseq
        %v1860 = vshrl.u32 %v1859, 7
        %v1861 = vsub.s32 %v1858, %v1860
        %v1862 = vrot.slane %v1753, %v1861
        %vm1863 = vcmask 1048512
        %v1864 = vsel %vm1863, %v1862, %v1857
        %v1866 = vunpack.c.l.s4 1966171168
        %v1867 = vunpack.c.0.s8 %v1866
        %v1868 = vlaneseq
        %v1869 = vshrl.u32 %v1868, 7
        %v1870 = vsub.s32 %v1867, %v1869
        %v1871 = vrot.slane %v1864, %v1870
        %v1873 = vunpack.c.l.s4 1966171168
        %v1874 = vunpack.c.0.s8 %v1873
        %v1875 = vlaneseq
        %v1876 = vshrl.u32 %v1875, 7
        %v1877 = vsub.s32 %v1874, %v1876
        %v1878 = vrot.slane %v1871, %v1877
        %v1880 = vsel %vm393, %v1878, 0.0
        %1881 = vst [vmem:[%s302] sm:$0x1] %v1880
        %p1882 = scmp.eq.s32.totalorder %s27, 0
        // Predicated region
        $region45: #{tpu_custom_call.1} parent=35 // pred_check
          %p1883 = pneg %p1882
        $region46: #{tpu_custom_call.1} parent=35 // pred_check_branch
          %1885 = sbr.rel (%p1883) target = $region48
        $region47: #{tpu_custom_call.1} parent=35 // pred_region
          %s1886 = vtos %v311
          %s1887 = scalar_lea.smem [#allocation8], 0
          %1888 = sst [smem:[%s1887]] %s1886
        $region48: #{tpu_custom_call.1} parent=35 // pred_fallthru
          _
        %s1889 = sand.u32 %s160, 1
        %s1890 = scalar_lea.sflag [#allocation4], %s1889
        %s1891 = sand.u32 %s160, 1
        %s1892 = scalar_lea.vmem [#allocation9], %s1891
        // Predicated region
        $region49: #{tpu_custom_call.1} parent=35 // pred_check
          %p1893 = pneg %p144
        $region50: #{tpu_custom_call.1} parent=35 // pred_check_branch
          %1895 = sbr.rel (%p1893) target = $region52
        $region51: #{tpu_custom_call.1} parent=35 // pred_region
          %s1897 = ssub.s32 16, 16
          %1898 = vsyncadd [#allocation5], %s1897
          %1901 = dma.smem_to_hbm [#allocation8], 16, %s4, [#allocation5]
        $region52: #{tpu_custom_call.1} parent=35 // pred_fallthru
          _
        // Predicated region
        $region53: #{tpu_custom_call.1} parent=35 // pred_check
          %p1902 = pneg %p170
        $region54: #{tpu_custom_call.1} parent=35 // pred_check_branch
          %1904 = sbr.rel (%p1902) target = $region56
        $region55: #{tpu_custom_call.1} parent=35 // pred_region
          %s1906 = ssub.s32 16, 16
          %1907 = vsyncadd %s1890, %s1906
          %s1908 = smul.addr %s27, 16
          %s1909 = scalar_lea.hbm %s5, %s1908
          %s1911 = sshll.u32 %s1892, 4
          %s1912 = int_to_ptr.vmem [resolvable:$true] %s1911
          %1914 = dma.vmem_to_hbm [thread:$0]  %s1912, 16, %s1909, %s1890
        $region56: #{tpu_custom_call.1} parent=35 // pred_fallthru
          _
        // Predicated region
        $region57: #{tpu_custom_call.1} parent=35 // pred_check
          %p1915 = pneg %p144
        $region58: #{tpu_custom_call.1} parent=35 // pred_check_branch
          %1917 = sbr.rel (%p1915) target = $region60
        $region59: #{tpu_custom_call.1} parent=35 // pred_region
          %1918 = dma.done [#allocation5], 16
        $region60: #{tpu_custom_call.1} parent=35 // pred_fallthru
          _
        %1919 = sfence
      $region36: #{tpu_custom_call.1} parent=5 // pred_fallthru
        _
      %p1920 = scmp.le.s32.totalorder 2, %s22
      // Predicated region
      $region61: #{tpu_custom_call.1} parent=5 // pred_check
        %p1921 = pneg %p1920
      $region62: #{tpu_custom_call.1} parent=5 // pred_check_branch
        %1923 = sbr.rel (%p1921) target = $region64
      $region63: #{tpu_custom_call.1} parent=5 // pred_region
        %s1924 = ssub.s32 %s22, 2
        // Predicated region
        $region65: #{tpu_custom_call.1} parent=63 // pred_check
          %p1925 = pneg %p176
        $region66: #{tpu_custom_call.1} parent=63 // pred_check_branch
          %1927 = sbr.rel (%p1925) target = $region68
        $region67: #{tpu_custom_call.1} parent=63 // pred_region
          %s1928 = sand.u32 %s161, 1
          %s1929 = scalar_lea.sflag [#allocation4], %s1928
          %s1930 = sand.u32 %s161, 1
          %s1931 = scalar_lea.vmem [#allocation9], %s1930
          %1932 = dma.done %s1929, 16
        $region68: #{tpu_custom_call.1} parent=63 // pred_fallthru
          _
      $region64: #{tpu_custom_call.1} parent=5 // pred_fallthru
        _
    $region6: #{tpu_custom_call.1} parent=1 // loop_footer
      %s26 = sadd.s32 1, %s22
    $region7: #{tpu_custom_call.1} parent=1 // loop_footer_branch
      %21 = sbr.rel target = $region3
    $region8: #{tpu_custom_call.1} parent=1 // loop_exit
      _
    %1933 = vsyncpa [#allocation3], 1
    %s1934 = scalar_lea.sflag [#allocation3], 1
    %1935 = vsyncpa %s1934, 1
    %1936 = vsyncpa [#allocation7], 1
    %s1937 = scalar_lea.sflag [#allocation7], 1
    %1938 = vsyncpa %s1937, 1
    %1939 = vsyncpa [#allocation4], 1
    %s1940 = scalar_lea.sflag [#allocation4], 1
    %1941 = vsyncpa %s1940, 1
    %1942 = vsyncpa [#allocation5], 1
    %s1943 = scalar_lea.sflag [#allocation5], 1
    %1944 = vsyncpa %s1943, 1

</llo_original>
